<compile_context>
chip_gen: v7x
topology: tpu7x:2x2x1
jax: 0.10.0
libtpu: 0.0.40
codegen_flags: <defaults>
</compile_context>

<pallas_src>
import functools

import jax
import jax.numpy as jnp
from jax.experimental import pallas as pl
from jax.experimental.pallas import tpu as pltpu

_NEG_BIG = -1e30


def _round_up(x, m):
    return ((x + m - 1) // m) * m


def padded_logit_dim(action_dim):
    """Lane-dense logit dim with room to pack the G sampled actions next to the probs."""
    A0, G = action_dim
    return _round_up(A0 + G, 128)


def _actor_kernel(state_ref, mask_ref, u_ref,
                  w1_ref, b1_ref, w2_ref, b2_ref, w3_ref, b3_ref, w4_ref, b4_ref,
                  mexp_ref, gmat_ref, gmat_t_ref, tri_ref, kidx_ref, place_ref,
                  out_ref, logp_ref, *, num_sub):
    wdt = w1_ref.dtype                                   # bf16 weights (MXU native)

    # ---- MLP trunk: 4 bf16 matmuls, f32 accumulate, ReLU ----
    x = state_ref[...]                                   # already bf16 (cast in wrapper)
    h = jnp.dot(x, w1_ref[...], preferred_element_type=jnp.float32) + b1_ref[...]
    h = jnp.maximum(h, 0.0)
    h = jnp.dot(h.astype(wdt), w2_ref[...], preferred_element_type=jnp.float32) + b2_ref[...]
    h = jnp.maximum(h, 0.0)
    h = jnp.dot(h.astype(wdt), w3_ref[...], preferred_element_type=jnp.float32) + b3_ref[...]
    h = jnp.maximum(h, 0.0)
    # Logits on the padded lane-dense dim; pad lanes carry -1e30 from the padded bias.
    # The unpadded (TB, A0) mask is expanded onto the real lanes with an exact 0/1 matmul.
    logits = (jnp.dot(h.astype(wdt), w4_ref[...], preferred_element_type=jnp.float32)
              + b4_ref[...]
              + jnp.dot(mask_ref[...], mexp_ref[...], preferred_element_type=jnp.float32))

    # ---- grouped softmax (== torch view(B, G, K).softmax(-1)) ----
    # A single row max is a valid shift (softmax is invariant to any per-group constant);
    # pad lanes (-1e30) never win it.
    # TODO(synk): a fully masked group (all -1e9) degenerates to probs=0 here instead of
    # torch's uniform-over-forbidden behavior; add an explicit guard if that is reachable.
    m = jnp.max(logits, axis=-1, keepdims=True)                              # (TB, 1)
    e = jnp.exp(logits - m)                                                  # pad lanes -> 0
    gsum = jnp.dot(e, gmat_ref[...], preferred_element_type=jnp.float32)     # (TB, G)
    inv = 1.0 / jnp.maximum(gsum, 1e-30)                                     # exact f32 normalize
    probs = e * jnp.dot(inv, gmat_t_ref[...], preferred_element_type=jnp.float32)

    # ---- fused Categorical(probs).sample(): inverse CDF within each group ----
    # The bf16 tri matmul only perturbs the sampling threshold by <~4e-3; probs/log_prob
    # below stay exact f32.
    csum = jnp.dot(probs.astype(tri_ref.dtype), tri_ref[...],
                   preferred_element_type=jnp.float32)                       # in-group cumsum
    u_b = jnp.dot(u_ref[...], gmat_t_ref[...], preferred_element_type=jnp.float32)
    below = jnp.where(csum < u_b, 1.0, 0.0)
    cnt = jnp.dot(below, gmat_ref[...], preferred_element_type=jnp.float32)  # (TB, G)
    act_f = jnp.minimum(cnt, jnp.float32(num_sub - 1))                       # sampled sub-ids

    # ---- dist.log_prob(actions).sum(-1), from the exact f32 probs ----
    # Invariant: act_f / kidx hold exact small integers as floats, so == is exact.
    act_b = jnp.dot(act_f, gmat_t_ref[...], preferred_element_type=jnp.float32)
    sel = jnp.where(kidx_ref[...] == act_b, probs, 0.0)
    p_sel = jnp.dot(sel, gmat_ref[...], preferred_element_type=jnp.float32)  # (TB, G)
    logp_ref[...] = jnp.sum(jnp.log(p_sel), axis=-1, keepdims=True)

    # ---- single lane-dense output slab: probs in [0, A0), actions in [A0, A0+G) ----
    slab = probs + jnp.dot(act_f, place_ref[...], preferred_element_type=jnp.float32)
    out_ref[...] = slab.astype(out_ref.dtype)


def make_group_tables(action_dim, padded_logits):
    """Constant tables for the grouped softmax / sampler / packing (built ONCE)."""
    A0, G = action_dim
    K = A0 // G
    a = jnp.arange(padded_logits)
    grp = jnp.where(a < A0, a // K, -1)
    gmat = (grp[:, None] == jnp.arange(G)[None, :]).astype(jnp.float32)            # (A0P, G)
    gmat_t = jnp.transpose(gmat)                                                    # (G, A0P)
    same = (grp[:, None] == grp[None, :]) & (grp[:, None] >= 0)
    tri = jnp.where(same & (a[:, None] <= a[None, :]), 1.0, 0.0).astype(jnp.bfloat16)  # (A0P,A0P)
    kidx = jnp.where(a < A0, (a % K).astype(jnp.float32), -1.0)[None, :]            # (1, A0P)
    mexp = (jnp.arange(A0)[:, None] == a[None, :]).astype(jnp.float32)              # (A0, A0P)
    place = (jnp.arange(G)[:, None] + A0 == a[None, :]).astype(jnp.float32)         # (G, A0P)
    return gmat, gmat_t, tri, kidx, mexp, place


def init_params(key, state_dim, hidden_dim, out_dim, weight_dtype=jnp.bfloat16):
    """Torch-style Linear init; weights (in, out) in bf16 (MXU native), biases f32."""
    ks = jax.random.split(key, 8)

    def lin(kw, kb, fan_in, fan_out):
        bound = 1.0 / (fan_in ** 0.5)
        w = jax.random.uniform(kw, (fan_in, fan_out), jnp.float32, -bound, bound)
        b = jax.random.uniform(kb, (1, fan_out), jnp.float32, -bound, bound)
        return w.astype(weight_dtype), b

    w1, b1 = lin(ks[0], ks[1], state_dim, hidden_dim)
    w2, b2 = lin(ks[2], ks[3], hidden_dim, hidden_dim)
    w3, b3 = lin(ks[4], ks[5], hidden_dim, hidden_dim)
    w4, b4 = lin(ks[6], ks[7], hidden_dim, out_dim)
    return (w1, b1, w2, b2, w3, b3, w4, b4)


def prepare_params(params, padded_logits):
    """Pad the last layer to the lane-dense logit dim (pad logits forced to -1e30)."""
    w1, b1, w2, b2, w3, b3, w4, b4 = params
    pad = padded_logits - w4.shape[1]
    w4p = jnp.pad(w4, ((0, 0), (0, pad)))
    b4p = jnp.pad(b4.astype(jnp.float32), ((0, 0), (0, pad)), constant_values=_NEG_BIG)
    return (w1, b1, w2, b2, w3, b3, w4p, b4p)


def discert_actor_forward(state, mask, params, tables, seed, *, action_dim, tile_b=1024):
    """Mirrors DiscertActor.forward (batched path) + Categorical sample / log_prob.

    Returns (actions (B, G) int32, log_prob (B,) f32, probs (B, G, K) f32).
    """
    # TODO(synk): the unbatched branch (state.shape[0] == state_dim) is not implemented.
    A0, G = action_dim
    K = A0 // G
    B, S = state.shape
    w1, b1, w2, b2, w3, b3, w4, b4 = params
    H = w1.shape[1]
    A0P = w4.shape[1]                       # lane-dense padded logit dim (>= A0 + G)
    gmat, gmat_t, tri, kidx, mexp, place = tables

    if mask is None:
        mask = jnp.zeros((B, A0), jnp.float32)
    mask = mask.astype(jnp.float32)

    # Batch tile: big enough to amortize per-grid-step overhead, multiple of 16 (bf16
    # sublane packing), and >= 2 grid steps whenever the batch allows it so both
    # TensorCores of a v7x megacore get work.  tile_b=1024 keeps the in-kernel VMEM
    # footprint well inside even v5e's 16 MiB default scoped limit.
    tile_b = _round_up(max(16, min(int(tile_b), B)), 16)
    if B > 16:
        tile_b = min(tile_b, _round_up((B + 1) // 2, 16))
    Bp = _round_up(B, tile_b)

    # Uniforms for the inverse-CDF sampler, drawn at (B, G) so the random stream does not
    # depend on tiling / padding.  u in [1e-6, 1) keeps prob-0 (masked) actions unreachable.
    u = jax.random.uniform(jax.random.PRNGKey(seed), (B, G), jnp.float32, 1e-6, 1.0)

    state_p = state.astype(jnp.bfloat16)                 # layer-1 matmul is bf16 anyway
    if Bp != B:
        pad = Bp - B
        state_p = jnp.pad(state_p, ((0, pad), (0, 0)))
        mask = jnp.pad(mask, ((0, pad), (0, 0)))
        u = jnp.pad(u, ((0, pad), (0, 0)), constant_values=0.5)

    slab_dtype = jnp.bfloat16 if K <= 256 else jnp.float32   # action ids must be exact

    row = lambda i: (i, 0)      # batch-tiled operands (pipelined over the grid)
    rep = lambda i: (0, 0)      # resident operands (weights, tables): fetched once

    grid_spec = pltpu.PrefetchScalarGridSpec(
        num_scalar_prefetch=0,
        grid=(Bp // tile_b,),
        in_specs=[
            pl.BlockSpec((tile_b, S), row),        # state (bf16)
            pl.BlockSpec((tile_b, A0), row),       # mask, unpadded
            pl.BlockSpec((tile_b, G), row),        # sampler uniforms
            pl.BlockSpec((S, H), rep),             # w1
            pl.BlockSpec((1, H), rep),             # b1
            pl.BlockSpec((H, H), rep),             # w2
            pl.BlockSpec((1, H), rep),             # b2
            pl.BlockSpec((H, H), rep),             # w3
            pl.BlockSpec((1, H), rep),             # b3
            pl.BlockSpec((H, A0P), rep),           # w4 (padded)
            pl.BlockSpec((1, A0P), rep),           # b4 (padded, pad lanes = -1e30)
            pl.BlockSpec((A0, A0P), rep),          # mexp: mask -> padded lanes
            pl.BlockSpec((A0P, G), rep),           # gmat
            pl.BlockSpec((G, A0P), rep),           # gmat_t
            pl.BlockSpec((A0P, A0P), rep),         # tri (within-group cumsum, bf16)
            pl.BlockSpec((1, A0P), rep),           # kidx (index-within-group)
            pl.BlockSpec((G, A0P), rep),           # place (action packing lanes)
        ],
        out_specs=[
            pl.BlockSpec((tile_b, A0P), row),      # packed slab: probs + actions
            pl.BlockSpec((tile_b, 1), row),        # summed log-prob
        ],
    )

    slab_p, logp_p = pl.pallas_call(
        functools.partial(_actor_kernel, num_sub=K),
        out_shape=(jax.ShapeDtypeStruct((Bp, A0P), slab_dtype),
                   jax.ShapeDtypeStruct((Bp, 1), jnp.float32)),
        grid_spec=grid_spec,
        compiler_params=pltpu.CompilerParams(dimension_semantics=("parallel",)),
    )(state_p, mask, u, w1, b1, w2, b2, w3, b3, w4, b4,
      mexp, gmat, gmat_t, tri, kidx, place)

    probs = slab_p[:B, :A0].astype(jnp.float32).reshape(B, G, K)
    actions = slab_p[:B, A0:A0 + G].astype(jnp.int32)
    return actions, logp_p[:B, 0], probs


def _reference_probs(state, mask, params, action_dim):
    """Plain-XLA reference of the same forward math (same bf16 matmul path)."""
    w1, b1, w2, b2, w3, b3, w4, b4 = params
    A0, G = action_dim
    K = A0 // G
    dot = lambda x, w: jnp.dot(x.astype(w.dtype), w, preferred_element_type=jnp.float32)
    h = jax.nn.relu(dot(state, w1) + b1)
    h = jax.nn.relu(dot(h, w2) + b2)
    h = jax.nn.relu(dot(h, w3) + b3)
    logits = (dot(h, w4) + b4)[:, :A0] + mask
    return jax.nn.softmax(logits.reshape(state.shape[0], G, K), axis=-1)


if __name__ == "__main__":
    key = jax.random.PRNGKey(0)
    k_param, k_state = jax.random.split(key)

    B = 64
    state_dim = 32
    hidden_dim = 64
    action_dim = (16, 4)          # A0=16 logits, G=4 groups of K=4 actions each
    A0, G = action_dim
    K = A0 // G
    A0P = padded_logit_dim(action_dim)

    params = prepare_params(init_params(k_param, state_dim, hidden_dim, A0), A0P)
    tables = make_group_tables(action_dim, A0P)

    state = jax.random.normal(k_state, (B, state_dim), jnp.float32)
    # deterministic action mask: forbid the first action of every group
    mask = jnp.tile(jnp.array([[-1e9] + [0.0] * (K - 1)], jnp.float32), (B, G))

    fwd = jax.jit(functools.partial(discert_actor_forward, action_dim=action_dim))
    actions, log_prob, probs = fwd(state, mask, params, tables, 1234)
    jax.block_until_ready((actions, log_prob, probs))

    # ---- sanity checks ----
    assert actions.shape == (B, G) and log_prob.shape == (B,) and probs.shape == (B, G, K)
    # per-group probabilities sum to 1 (probs are returned via a bf16 slab -> loose tol)
    assert jnp.allclose(jnp.sum(probs, axis=-1), 1.0, atol=1e-2)
    # masked first action of every group has ~0 probability and is never sampled
    assert jnp.all(probs[:, :, 0] < 1e-6)
    assert jnp.all(actions >= 1) and jnp.all(actions < K)
    # probs match a plain-XLA reference of the same math (bf16 output storage)
    ref = _reference_probs(state, mask, params, action_dim)
    assert jnp.allclose(probs, ref, atol=8e-3), float(jnp.max(jnp.abs(probs - ref)))
    # fused log_prob (computed from exact f32 probs in-kernel) matches the reference
    lp_ref = jnp.sum(
        jnp.log(jnp.take_along_axis(ref, actions[..., None], axis=-1))[..., 0], axis=-1)
    assert jnp.allclose(log_prob, lp_ref, atol=1e-3)

    print("KERNEL_OK")
</pallas_src>

<mosaic_0001>
module attributes {stable_mosaic.version = 11 : i64} {
  func.func @_actor_kernel(%arg0: i32, %arg1: memref<32x32xbf16, #tpu.memory_space<vmem>>, %arg2: memref<32x16xf32, #tpu.memory_space<vmem>>, %arg3: memref<32x4xf32, #tpu.memory_space<vmem>>, %arg4: memref<32x64xbf16, #tpu.memory_space<vmem>>, %arg5: memref<1x64xf32, #tpu.memory_space<vmem>>, %arg6: memref<64x64xbf16, #tpu.memory_space<vmem>>, %arg7: memref<1x64xf32, #tpu.memory_space<vmem>>, %arg8: memref<64x64xbf16, #tpu.memory_space<vmem>>, %arg9: memref<1x64xf32, #tpu.memory_space<vmem>>, %arg10: memref<64x128xbf16, #tpu.memory_space<vmem>>, %arg11: memref<1x128xf32, #tpu.memory_space<vmem>>, %arg12: memref<16x128xf32, #tpu.memory_space<vmem>>, %arg13: memref<128x4xf32, #tpu.memory_space<vmem>>, %arg14: memref<4x128xf32, #tpu.memory_space<vmem>>, %arg15: memref<128x128xbf16, #tpu.memory_space<vmem>>, %arg16: memref<1x128xf32, #tpu.memory_space<vmem>>, %arg17: memref<4x128xf32, #tpu.memory_space<vmem>>, %arg18: memref<32x128xbf16, #tpu.memory_space<vmem>>, %arg19: memref<32x1xf32, #tpu.memory_space<vmem>>) attributes {dimension_semantics = [#tpu.dimension_semantics<parallel>], iteration_bounds = array<i64: 2>, scalar_prefetch = 0 : i64, scratch_operands = 0 : i64, tpu.core_type = #tpu.core_type<tc>, window_params = [{transform_indices = @transform_0, window_bounds = array<i64: 32, 32>}, {transform_indices = @transform_1, window_bounds = array<i64: 32, 16>}, {transform_indices = @transform_2, window_bounds = array<i64: 32, 4>}, {pipeline_mode = #tpu.pipeline_mode<synchronous>, transform_indices = @transform_3, window_bounds = array<i64: 32, 64>}, {pipeline_mode = #tpu.pipeline_mode<synchronous>, transform_indices = @transform_4, window_bounds = array<i64: 1, 64>}, {pipeline_mode = #tpu.pipeline_mode<synchronous>, transform_indices = @transform_5, window_bounds = array<i64: 64, 64>}, {pipeline_mode = #tpu.pipeline_mode<synchronous>, transform_indices = @transform_6, window_bounds = array<i64: 1, 64>}, {pipeline_mode = #tpu.pipeline_mode<synchronous>, transform_indices = @transform_7, window_bounds = array<i64: 64, 64>}, {pipeline_mode = #tpu.pipeline_mode<synchronous>, transform_indices = @transform_8, window_bounds = array<i64: 1, 64>}, {pipeline_mode = #tpu.pipeline_mode<synchronous>, transform_indices = @transform_9, window_bounds = array<i64: 64, 128>}, {pipeline_mode = #tpu.pipeline_mode<synchronous>, transform_indices = @transform_10, window_bounds = array<i64: 1, 128>}, {pipeline_mode = #tpu.pipeline_mode<synchronous>, transform_indices = @transform_11, window_bounds = array<i64: 16, 128>}, {pipeline_mode = #tpu.pipeline_mode<synchronous>, transform_indices = @transform_12, window_bounds = array<i64: 128, 4>}, {pipeline_mode = #tpu.pipeline_mode<synchronous>, transform_indices = @transform_13, window_bounds = array<i64: 4, 128>}, {pipeline_mode = #tpu.pipeline_mode<synchronous>, transform_indices = @transform_14, window_bounds = array<i64: 128, 128>}, {pipeline_mode = #tpu.pipeline_mode<synchronous>, transform_indices = @transform_15, window_bounds = array<i64: 1, 128>}, {pipeline_mode = #tpu.pipeline_mode<synchronous>, transform_indices = @transform_16, window_bounds = array<i64: 4, 128>}, {transform_indices = @transform_17, window_bounds = array<i64: 32, 128>}, {transform_indices = @transform_18, window_bounds = array<i64: 32, 1>}]} {
    %c0 = arith.constant 0 : index
    %c0_0 = arith.constant 0 : index
    %0 = vector.load %arg1[%c0, %c0_0] : memref<32x32xbf16, #tpu.memory_space<vmem>>, vector<32x32xbf16>
    %c0_1 = arith.constant 0 : index
    %c0_2 = arith.constant 0 : index
    %1 = vector.load %arg4[%c0_1, %c0_2] : memref<32x64xbf16, #tpu.memory_space<vmem>>, vector<32x64xbf16>
    %cst = arith.constant dense<0.000000e+00> : vector<32x64xf32>
    %2 = tpu.matmul %0, %1, %cst {dimension_numbers = #tpu.dot_dimension_numbers<[1], [0], [0], [1], [0, 0, 1, 1], [], []>} : vector<32x32xbf16>, vector<32x64xbf16>, vector<32x64xf32> -> vector<32x64xf32>
    %c0_3 = arith.constant 0 : index
    %c0_4 = arith.constant 0 : index
    %3 = vector.load %arg5[%c0_3, %c0_4] : memref<1x64xf32, #tpu.memory_space<vmem>>, vector<1x64xf32>
    %4 = vector.broadcast %3 : vector<1x64xf32> to vector<32x64xf32>
    %5 = arith.addf %2, %4 : vector<32x64xf32>
    %cst_5 = arith.constant 0.000000e+00 : f32
    %6 = vector.broadcast %cst_5 : f32 to vector<32x64xf32>
    %7 = arith.maximumf %5, %6 : vector<32x64xf32>
    %8 = arith.truncf %7 : vector<32x64xf32> to vector<32x64xbf16>
    %c0_6 = arith.constant 0 : index
    %c0_7 = arith.constant 0 : index
    %9 = vector.load %arg6[%c0_6, %c0_7] : memref<64x64xbf16, #tpu.memory_space<vmem>>, vector<64x64xbf16>
    %cst_8 = arith.constant dense<0.000000e+00> : vector<32x64xf32>
    %10 = tpu.matmul %8, %9, %cst_8 {dimension_numbers = #tpu.dot_dimension_numbers<[1], [0], [0], [1], [0, 0, 1, 1], [], []>} : vector<32x64xbf16>, vector<64x64xbf16>, vector<32x64xf32> -> vector<32x64xf32>
    %c0_9 = arith.constant 0 : index
    %c0_10 = arith.constant 0 : index
    %11 = vector.load %arg7[%c0_9, %c0_10] : memref<1x64xf32, #tpu.memory_space<vmem>>, vector<1x64xf32>
    %12 = vector.broadcast %11 : vector<1x64xf32> to vector<32x64xf32>
    %13 = arith.addf %10, %12 : vector<32x64xf32>
    %cst_11 = arith.constant 0.000000e+00 : f32
    %14 = vector.broadcast %cst_11 : f32 to vector<32x64xf32>
    %15 = arith.maximumf %13, %14 : vector<32x64xf32>
    %16 = arith.truncf %15 : vector<32x64xf32> to vector<32x64xbf16>
    %c0_12 = arith.constant 0 : index
    %c0_13 = arith.constant 0 : index
    %17 = vector.load %arg8[%c0_12, %c0_13] : memref<64x64xbf16, #tpu.memory_space<vmem>>, vector<64x64xbf16>
    %cst_14 = arith.constant dense<0.000000e+00> : vector<32x64xf32>
    %18 = tpu.matmul %16, %17, %cst_14 {dimension_numbers = #tpu.dot_dimension_numbers<[1], [0], [0], [1], [0, 0, 1, 1], [], []>} : vector<32x64xbf16>, vector<64x64xbf16>, vector<32x64xf32> -> vector<32x64xf32>
    %c0_15 = arith.constant 0 : index
    %c0_16 = arith.constant 0 : index
    %19 = vector.load %arg9[%c0_15, %c0_16] : memref<1x64xf32, #tpu.memory_space<vmem>>, vector<1x64xf32>
    %20 = vector.broadcast %19 : vector<1x64xf32> to vector<32x64xf32>
    %21 = arith.addf %18, %20 : vector<32x64xf32>
    %cst_17 = arith.constant 0.000000e+00 : f32
    %22 = vector.broadcast %cst_17 : f32 to vector<32x64xf32>
    %23 = arith.maximumf %21, %22 : vector<32x64xf32>
    %24 = arith.truncf %23 : vector<32x64xf32> to vector<32x64xbf16>
    %c0_18 = arith.constant 0 : index
    %c0_19 = arith.constant 0 : index
    %25 = vector.load %arg10[%c0_18, %c0_19] : memref<64x128xbf16, #tpu.memory_space<vmem>>, vector<64x128xbf16>
    %cst_20 = arith.constant dense<0.000000e+00> : vector<32x128xf32>
    %26 = tpu.matmul %24, %25, %cst_20 {dimension_numbers = #tpu.dot_dimension_numbers<[1], [0], [0], [1], [0, 0, 1, 1], [], []>} : vector<32x64xbf16>, vector<64x128xbf16>, vector<32x128xf32> -> vector<32x128xf32>
    %c0_21 = arith.constant 0 : index
    %c0_22 = arith.constant 0 : index
    %27 = vector.load %arg11[%c0_21, %c0_22] : memref<1x128xf32, #tpu.memory_space<vmem>>, vector<1x128xf32>
    %28 = vector.broadcast %27 : vector<1x128xf32> to vector<32x128xf32>
    %29 = arith.addf %26, %28 : vector<32x128xf32>
    %c0_23 = arith.constant 0 : index
    %c0_24 = arith.constant 0 : index
    %30 = vector.load %arg2[%c0_23, %c0_24] : memref<32x16xf32, #tpu.memory_space<vmem>>, vector<32x16xf32>
    %c0_25 = arith.constant 0 : index
    %c0_26 = arith.constant 0 : index
    %31 = vector.load %arg12[%c0_25, %c0_26] : memref<16x128xf32, #tpu.memory_space<vmem>>, vector<16x128xf32>
    %cst_27 = arith.constant dense<0.000000e+00> : vector<32x128xf32>
    %32 = tpu.matmul %30, %31, %cst_27 {dimension_numbers = #tpu.dot_dimension_numbers<[1], [0], [0], [1], [0, 0, 1, 1], [], []>} : vector<32x16xf32>, vector<16x128xf32>, vector<32x128xf32> -> vector<32x128xf32>
    %33 = arith.addf %29, %32 : vector<32x128xf32>
    %cst_28 = arith.constant dense<0xFF800000> : vector<32xf32>
    %34 = vector.multi_reduction <maximumf>, %33, %cst_28 [1] : vector<32x128xf32> to vector<32xf32>
    %35 = vector.shape_cast %34 : vector<32xf32> to vector<32x1xf32>
    %36 = vector.broadcast %35 : vector<32x1xf32> to vector<32x128xf32>
    %37 = arith.subf %33, %36 : vector<32x128xf32>
    %38 = math.exp %37 : vector<32x128xf32>
    %c0_29 = arith.constant 0 : index
    %c0_30 = arith.constant 0 : index
    %39 = vector.load %arg13[%c0_29, %c0_30] : memref<128x4xf32, #tpu.memory_space<vmem>>, vector<128x4xf32>
    %cst_31 = arith.constant dense<0.000000e+00> : vector<32x4xf32>
    %40 = tpu.matmul %38, %39, %cst_31 {dimension_numbers = #tpu.dot_dimension_numbers<[1], [0], [0], [1], [0, 0, 1, 1], [], []>} : vector<32x128xf32>, vector<128x4xf32>, vector<32x4xf32> -> vector<32x4xf32>
    %cst_32 = arith.constant 1.000000e-30 : f32
    %41 = vector.broadcast %cst_32 : f32 to vector<32x4xf32>
    %42 = arith.maximumf %40, %41 : vector<32x4xf32>
    %cst_33 = arith.constant 1.000000e+00 : f32
    %43 = vector.broadcast %cst_33 : f32 to vector<32x4xf32>
    %44 = arith.divf %43, %42 : vector<32x4xf32>
    %c0_34 = arith.constant 0 : index
    %c0_35 = arith.constant 0 : index
    %45 = vector.load %arg14[%c0_34, %c0_35] : memref<4x128xf32, #tpu.memory_space<vmem>>, vector<4x128xf32>
    %cst_36 = arith.constant dense<0.000000e+00> : vector<32x128xf32>
    %46 = tpu.matmul %44, %45, %cst_36 {dimension_numbers = #tpu.dot_dimension_numbers<[1], [0], [0], [1], [0, 0, 1, 1], [], []>} : vector<32x4xf32>, vector<4x128xf32>, vector<32x128xf32> -> vector<32x128xf32>
    %47 = arith.mulf %38, %46 : vector<32x128xf32>
    %48 = arith.truncf %47 : vector<32x128xf32> to vector<32x128xbf16>
    %c0_37 = arith.constant 0 : index
    %c0_38 = arith.constant 0 : index
    %49 = vector.load %arg15[%c0_37, %c0_38] : memref<128x128xbf16, #tpu.memory_space<vmem>>, vector<128x128xbf16>
    %cst_39 = arith.constant dense<0.000000e+00> : vector<32x128xf32>
    %50 = tpu.matmul %48, %49, %cst_39 {dimension_numbers = #tpu.dot_dimension_numbers<[1], [0], [0], [1], [0, 0, 1, 1], [], []>} : vector<32x128xbf16>, vector<128x128xbf16>, vector<32x128xf32> -> vector<32x128xf32>
    %c0_40 = arith.constant 0 : index
    %c0_41 = arith.constant 0 : index
    %51 = vector.load %arg3[%c0_40, %c0_41] : memref<32x4xf32, #tpu.memory_space<vmem>>, vector<32x4xf32>
    %c0_42 = arith.constant 0 : index
    %c0_43 = arith.constant 0 : index
    %52 = vector.load %arg14[%c0_42, %c0_43] : memref<4x128xf32, #tpu.memory_space<vmem>>, vector<4x128xf32>
    %cst_44 = arith.constant dense<0.000000e+00> : vector<32x128xf32>
    %53 = tpu.matmul %51, %52, %cst_44 {dimension_numbers = #tpu.dot_dimension_numbers<[1], [0], [0], [1], [0, 0, 1, 1], [], []>} : vector<32x4xf32>, vector<4x128xf32>, vector<32x128xf32> -> vector<32x128xf32>
    %54 = arith.cmpf olt, %50, %53 : vector<32x128xf32>
    %cst_45 = arith.constant 1.000000e+00 : f32
    %cst_46 = arith.constant 0.000000e+00 : f32
    %55 = vector.broadcast %cst_45 : f32 to vector<32x128xf32>
    %56 = vector.broadcast %cst_46 : f32 to vector<32x128xf32>
    %57 = arith.select %54, %55, %56 : vector<32x128xi1>, vector<32x128xf32>
    %c0_47 = arith.constant 0 : index
    %c0_48 = arith.constant 0 : index
    %58 = vector.load %arg13[%c0_47, %c0_48] : memref<128x4xf32, #tpu.memory_space<vmem>>, vector<128x4xf32>
    %cst_49 = arith.constant dense<0.000000e+00> : vector<32x4xf32>
    %59 = tpu.matmul %57, %58, %cst_49 {dimension_numbers = #tpu.dot_dimension_numbers<[1], [0], [0], [1], [0, 0, 1, 1], [], []>} : vector<32x128xf32>, vector<128x4xf32>, vector<32x4xf32> -> vector<32x4xf32>
    %cst_50 = arith.constant 3.000000e+00 : f32
    %60 = vector.broadcast %cst_50 : f32 to vector<32x4xf32>
    %61 = arith.minimumf %59, %60 : vector<32x4xf32>
    %c0_51 = arith.constant 0 : index
    %c0_52 = arith.constant 0 : index
    %62 = vector.load %arg14[%c0_51, %c0_52] : memref<4x128xf32, #tpu.memory_space<vmem>>, vector<4x128xf32>
    %cst_53 = arith.constant dense<0.000000e+00> : vector<32x128xf32>
    %63 = tpu.matmul %61, %62, %cst_53 {dimension_numbers = #tpu.dot_dimension_numbers<[1], [0], [0], [1], [0, 0, 1, 1], [], []>} : vector<32x4xf32>, vector<4x128xf32>, vector<32x128xf32> -> vector<32x128xf32>
    %c0_54 = arith.constant 0 : index
    %c0_55 = arith.constant 0 : index
    %64 = vector.load %arg16[%c0_54, %c0_55] : memref<1x128xf32, #tpu.memory_space<vmem>>, vector<1x128xf32>
    %65 = vector.broadcast %64 : vector<1x128xf32> to vector<32x128xf32>
    %66 = arith.cmpf oeq, %65, %63 : vector<32x128xf32>
    %cst_56 = arith.constant 0.000000e+00 : f32
    %67 = vector.broadcast %cst_56 : f32 to vector<32x128xf32>
    %68 = arith.select %66, %47, %67 : vector<32x128xi1>, vector<32x128xf32>
    %c0_57 = arith.constant 0 : index
    %c0_58 = arith.constant 0 : index
    %69 = vector.load %arg13[%c0_57, %c0_58] : memref<128x4xf32, #tpu.memory_space<vmem>>, vector<128x4xf32>
    %cst_59 = arith.constant dense<0.000000e+00> : vector<32x4xf32>
    %70 = tpu.matmul %68, %69, %cst_59 {dimension_numbers = #tpu.dot_dimension_numbers<[1], [0], [0], [1], [0, 0, 1, 1], [], []>} : vector<32x128xf32>, vector<128x4xf32>, vector<32x4xf32> -> vector<32x4xf32>
    %71 = math.log %70 : vector<32x4xf32>
    %cst_60 = arith.constant dense<0.000000e+00> : vector<32xf32>
    %72 = vector.multi_reduction <add>, %71, %cst_60 [1] : vector<32x4xf32> to vector<32xf32>
    %73 = vector.shape_cast %72 : vector<32xf32> to vector<32x1xf32>
    %c0_61 = arith.constant 0 : index
    %c0_62 = arith.constant 0 : index
    %74 = vector.load %arg19[%c0_61, %c0_62] : memref<32x1xf32, #tpu.memory_space<vmem>>, vector<32x1xf32>
    tpu.vector_store %arg19[%c0_61, %c0_62], %73 {strides = array<i32>} : memref<32x1xf32, #tpu.memory_space<vmem>>, vector<32x1xf32>,
    %c0_63 = arith.constant 0 : index
    %c0_64 = arith.constant 0 : index
    %75 = vector.load %arg17[%c0_63, %c0_64] : memref<4x128xf32, #tpu.memory_space<vmem>>, vector<4x128xf32>
    %cst_65 = arith.constant dense<0.000000e+00> : vector<32x128xf32>
    %76 = tpu.matmul %61, %75, %cst_65 {dimension_numbers = #tpu.dot_dimension_numbers<[1], [0], [0], [1], [0, 0, 1, 1], [], []>} : vector<32x4xf32>, vector<4x128xf32>, vector<32x128xf32> -> vector<32x128xf32>
    %77 = arith.addf %47, %76 : vector<32x128xf32>
    %78 = arith.truncf %77 : vector<32x128xf32> to vector<32x128xbf16>
    %c0_66 = arith.constant 0 : index
    %c0_67 = arith.constant 0 : index
    %79 = vector.load %arg18[%c0_66, %c0_67] : memref<32x128xbf16, #tpu.memory_space<vmem>>, vector<32x128xbf16>
    tpu.vector_store %arg18[%c0_66, %c0_67], %78 {strides = array<i32>} : memref<32x128xbf16, #tpu.memory_space<vmem>>, vector<32x128xbf16>,
    return
  }
  func.func @transform_0(%arg0: i32) -> (i32, i32) {
    %c0_i32 = arith.constant 0 : i32
    %c0_i32_0 = arith.constant 0 : i32
    return %arg0, %c0_i32 : i32, i32
  }
  func.func @transform_1(%arg0: i32) -> (i32, i32) {
    %c0_i32 = arith.constant 0 : i32
    %c0_i32_0 = arith.constant 0 : i32
    return %arg0, %c0_i32 : i32, i32
  }
  func.func @transform_2(%arg0: i32) -> (i32, i32) {
    %c0_i32 = arith.constant 0 : i32
    %c0_i32_0 = arith.constant 0 : i32
    return %arg0, %c0_i32 : i32, i32
  }
  func.func @transform_3(%arg0: i32) -> (i32, i32) {
    %c0_i32 = arith.constant 0 : i32
    %c0_i32_0 = arith.constant 0 : i32
    %c0_i32_1 = arith.constant 0 : i32
    return %c0_i32, %c0_i32_0 : i32, i32
  }
  func.func @transform_4(%arg0: i32) -> (i32, i32) {
    %c0_i32 = arith.constant 0 : i32
    %c0_i32_0 = arith.constant 0 : i32
    %c0_i32_1 = arith.constant 0 : i32
    return %c0_i32, %c0_i32_0 : i32, i32
  }
  func.func @transform_5(%arg0: i32) -> (i32, i32) {
    %c0_i32 = arith.constant 0 : i32
    %c0_i32_0 = arith.constant 0 : i32
    %c0_i32_1 = arith.constant 0 : i32
    return %c0_i32, %c0_i32_0 : i32, i32
  }
  func.func @transform_6(%arg0: i32) -> (i32, i32) {
    %c0_i32 = arith.constant 0 : i32
    %c0_i32_0 = arith.constant 0 : i32
    %c0_i32_1 = arith.constant 0 : i32
    return %c0_i32, %c0_i32_0 : i32, i32
  }
  func.func @transform_7(%arg0: i32) -> (i32, i32) {
    %c0_i32 = arith.constant 0 : i32
    %c0_i32_0 = arith.constant 0 : i32
    %c0_i32_1 = arith.constant 0 : i32
    return %c0_i32, %c0_i32_0 : i32, i32
  }
  func.func @transform_8(%arg0: i32) -> (i32, i32) {
    %c0_i32 = arith.constant 0 : i32
    %c0_i32_0 = arith.constant 0 : i32
    %c0_i32_1 = arith.constant 0 : i32
    return %c0_i32, %c0_i32_0 : i32, i32
  }
  func.func @transform_9(%arg0: i32) -> (i32, i32) {
    %c0_i32 = arith.constant 0 : i32
    %c0_i32_0 = arith.constant 0 : i32
    %c0_i32_1 = arith.constant 0 : i32
    return %c0_i32, %c0_i32_0 : i32, i32
  }
  func.func @transform_10(%arg0: i32) -> (i32, i32) {
    %c0_i32 = arith.constant 0 : i32
    %c0_i32_0 = arith.constant 0 : i32
    %c0_i32_1 = arith.constant 0 : i32
    return %c0_i32, %c0_i32_0 : i32, i32
  }
  func.func @transform_11(%arg0: i32) -> (i32, i32) {
    %c0_i32 = arith.constant 0 : i32
    %c0_i32_0 = arith.constant 0 : i32
    %c0_i32_1 = arith.constant 0 : i32
    return %c0_i32, %c0_i32_0 : i32, i32
  }
  func.func @transform_12(%arg0: i32) -> (i32, i32) {
    %c0_i32 = arith.constant 0 : i32
    %c0_i32_0 = arith.constant 0 : i32
    %c0_i32_1 = arith.constant 0 : i32
    return %c0_i32, %c0_i32_0 : i32, i32
  }
  func.func @transform_13(%arg0: i32) -> (i32, i32) {
    %c0_i32 = arith.constant 0 : i32
    %c0_i32_0 = arith.constant 0 : i32
    %c0_i32_1 = arith.constant 0 : i32
    return %c0_i32, %c0_i32_0 : i32, i32
  }
  func.func @transform_14(%arg0: i32) -> (i32, i32) {
    %c0_i32 = arith.constant 0 : i32
    %c0_i32_0 = arith.constant 0 : i32
    %c0_i32_1 = arith.constant 0 : i32
    return %c0_i32, %c0_i32_0 : i32, i32
  }
  func.func @transform_15(%arg0: i32) -> (i32, i32) {
    %c0_i32 = arith.constant 0 : i32
    %c0_i32_0 = arith.constant 0 : i32
    %c0_i32_1 = arith.constant 0 : i32
    return %c0_i32, %c0_i32_0 : i32, i32
  }
  func.func @transform_16(%arg0: i32) -> (i32, i32) {
    %c0_i32 = arith.constant 0 : i32
    %c0_i32_0 = arith.constant 0 : i32
    %c0_i32_1 = arith.constant 0 : i32
    return %c0_i32, %c0_i32_0 : i32, i32
  }
  func.func @transform_17(%arg0: i32) -> (i32, i32) {
    %c0_i32 = arith.constant 0 : i32
    %c0_i32_0 = arith.constant 0 : i32
    return %arg0, %c0_i32 : i32, i32
  }
  func.func @transform_18(%arg0: i32) -> (i32, i32) {
    %c0_i32 = arith.constant 0 : i32
    %c0_i32_0 = arith.constant 0 : i32
    return %arg0, %c0_i32 : i32, i32
  }
}

</mosaic_0001>

<llo_original>
// kernel: discert_actor_forward.1
$region0: #{discert_actor_forward.1}
  #allocation0 [shape = 'u32[]', space=smem, size = 0x4, offset = 0x4, fixed_abs, tag = 'smem constant byte address 0x4 - core index']
  #allocation1 [shape = 'u32[144,128]{1,0:T(1,128)}', space=vmem, size = 0x12000, scoped, tag = 'internal scratch']
  %s0 = inlined_call_operand.vmem [shape: bf16[64,32], index: 0, kind: input, shape index: {}]
  %s1 = inlined_call_operand.vmem [shape: f32[64,16], index: 1, kind: input, shape index: {}]
  %s2 = inlined_call_operand.vmem [shape: f32[64,4], index: 2, kind: input, shape index: {}]
  %s3 = inlined_call_operand.vmem [shape: bf16[32,64], index: 3, kind: input, shape index: {}]
  %s4 = inlined_call_operand.vmem [shape: f32[1,64], index: 4, kind: input, shape index: {}]
  %s5 = inlined_call_operand.vmem [shape: bf16[64,64], index: 5, kind: input, shape index: {}]
  %s6 = inlined_call_operand.vmem [shape: f32[1,64], index: 6, kind: input, shape index: {}]
  %s7 = inlined_call_operand.vmem [shape: bf16[64,64], index: 7, kind: input, shape index: {}]
  %s8 = inlined_call_operand.vmem [shape: f32[1,64], index: 8, kind: input, shape index: {}]
  %s9 = inlined_call_operand.vmem [shape: bf16[64,128], index: 9, kind: input, shape index: {}]
  %s10 = inlined_call_operand.vmem [shape: f32[1,128], index: 10, kind: input, shape index: {}]
  %s11 = inlined_call_operand.vmem [shape: f32[16,128], index: 11, kind: input, shape index: {}]
  %s12 = inlined_call_operand.vmem [shape: f32[128,4], index: 12, kind: input, shape index: {}]
  %s13 = inlined_call_operand.vmem [shape: f32[4,128], index: 13, kind: input, shape index: {}]
  %s14 = inlined_call_operand.vmem [shape: bf16[128,128], index: 14, kind: input, shape index: {}]
  %s15 = inlined_call_operand.vmem [shape: f32[1,128], index: 15, kind: input, shape index: {}]
  %s16 = inlined_call_operand.vmem [shape: f32[4,128], index: 16, kind: input, shape index: {}]
  %s17 = inlined_call_operand.vmem [shape: bf16[64,128], index: 17, kind: output, shape index: {0}]
  %s18 = inlined_call_operand.vmem [shape: f32[64,1], index: 18, kind: output, shape index: {1}]
  %19 = xla_tuple %s17, %s18
  %s20 = sld [smem:[#allocation0]]
  $region109: #{discert_actor_forward.1} parent=0
    _
  %s22 = ssub.s32 1, %s20
  %s23 = scalar_select 0, %s22, %s20
  loop: start=0, step=1, limit=4
  $region2: #{discert_actor_forward.1} parent=0 // loop_pre_header
    _
  $region3: #{discert_actor_forward.1} parent=0 // loop_header
    %s25 = sphi 0, %s29
    %p26 = scmp.ge.s32.totalorder %s25, 4
    %s35 = sphi 0, %s37
    %s38 = sphi 0, %s35
    %s39 = sphi 0, %s38
    %s55 = sphi 0, %s39
    %s61 = sphi 0, %s63
    %s64 = sphi 0, %s61
    %s65 = sphi 0, %s64
    %s81 = sphi 0, %s65
    %s87 = sphi 0, %s89
    %s90 = sphi 0, %s87
    %s91 = sphi 0, %s90
    %s107 = sphi 0, %s91
    %s111 = sphi 0, %s111
    %s113 = sphi 0, %s111
    %s114 = sphi 0, %s113
    %s128 = sphi 0, %s114
    %s132 = sphi 0, %s132
    %s134 = sphi 0, %s132
    %s135 = sphi 0, %s134
    %s149 = sphi 0, %s135
    %s153 = sphi 0, %s153
    %s155 = sphi 0, %s153
    %s156 = sphi 0, %s155
    %s170 = sphi 0, %s156
    %s174 = sphi 0, %s174
    %s176 = sphi 0, %s174
    %s177 = sphi 0, %s176
    %s191 = sphi 0, %s177
    %s195 = sphi 0, %s195
    %s197 = sphi 0, %s195
    %s198 = sphi 0, %s197
    %s212 = sphi 0, %s198
    %s216 = sphi 0, %s216
    %s218 = sphi 0, %s216
    %s219 = sphi 0, %s218
    %s233 = sphi 0, %s219
    %s237 = sphi 0, %s237
    %s239 = sphi 0, %s237
    %s240 = sphi 0, %s239
    %s254 = sphi 0, %s240
    %s258 = sphi 0, %s258
    %s260 = sphi 0, %s258
    %s261 = sphi 0, %s260
    %s275 = sphi 0, %s261
    %s279 = sphi 0, %s279
    %s281 = sphi 0, %s279
    %s282 = sphi 0, %s281
    %s296 = sphi 0, %s282
    %s300 = sphi 0, %s300
    %s302 = sphi 0, %s300
    %s303 = sphi 0, %s302
    %s317 = sphi 0, %s303
    %s321 = sphi 0, %s321
    %s323 = sphi 0, %s321
    %s324 = sphi 0, %s323
    %s338 = sphi 0, %s324
    %s342 = sphi 0, %s342
    %s344 = sphi 0, %s342
    %s345 = sphi 0, %s344
    %s359 = sphi 0, %s345
    %s363 = sphi 0, %s363
    %s365 = sphi 0, %s363
    %s366 = sphi 0, %s365
    %s380 = sphi 0, %s366
    %s384 = sphi 0, %s384
    %s386 = sphi 0, %s384
    %s387 = sphi 0, %s386
    %s401 = sphi 0, %s387
    %s407 = sphi 0, %s409
    %s410 = sphi 0, %s407
    %s411 = sphi 0, %s410
    %s427 = sphi 0, %s411
    %s433 = sphi 0, %s435
    %s436 = sphi 0, %s433
    %s437 = sphi 0, %s436
    %s453 = sphi 0, %s437
  $region4: #{discert_actor_forward.1} parent=0 // loop_header_branch
    %28 = sbr.rel (%p26) target = $region8
  $region5: #{discert_actor_forward.1} parent=0 // loop_body
    %s30 = ssub.s32 %s25, 1
    %s31 = ssub.s32 %s25, 2
    %s32 = sadd.s32 %s25, 1
    %s33 = ssub.s32 %s25, %s32
    %p34 = scmp.eq.s32.totalorder %s33, 0
    %s36 = sadd.s32 %s35, 1
    %s37 = scalar_select %p34, %s35, %s36
    %p40 = pneg %p34
    %p41 = scmp.eq.s32.totalorder %s25, 1
    %p42 = por %p40, %p41
    %p43 = scmp.ne.s32.totalorder %s35, %s38
    %p44 = scmp.eq.s32.totalorder %s25, 0
    %p45 = por %p43, %p44
    %p46 = scmp.ne.s32.totalorder %s35, %s38
    %p47 = scmp.eq.s32.totalorder %s30, 1
    %p48 = por %p46, %p47
    %p49 = scmp.ne.s32.totalorder %s38, %s39
    %p50 = scmp.eq.s32.totalorder %s30, 0
    %p51 = por %p49, %p50
    %p52 = scmp.ne.s32.totalorder %s38, %s39
    %p53 = scmp.eq.s32.totalorder %s31, 1
    %p54 = por %p52, %p53
    %p56 = scmp.ne.s32.totalorder %s39, %s55
    %p57 = scmp.eq.s32.totalorder %s31, 0
    %p58 = por %p56, %p57
    %s59 = ssub.s32 %s25, %s32
    %p60 = scmp.eq.s32.totalorder %s59, 0
    %s62 = sadd.s32 %s61, 1
    %s63 = scalar_select %p60, %s61, %s62
    %p66 = pneg %p60
    %p67 = scmp.eq.s32.totalorder %s25, 1
    %p68 = por %p66, %p67
    %p69 = scmp.ne.s32.totalorder %s61, %s64
    %p70 = scmp.eq.s32.totalorder %s25, 0
    %p71 = por %p69, %p70
    %p72 = scmp.ne.s32.totalorder %s61, %s64
    %p73 = scmp.eq.s32.totalorder %s30, 1
    %p74 = por %p72, %p73
    %p75 = scmp.ne.s32.totalorder %s64, %s65
    %p76 = scmp.eq.s32.totalorder %s30, 0
    %p77 = por %p75, %p76
    %p78 = scmp.ne.s32.totalorder %s64, %s65
    %p79 = scmp.eq.s32.totalorder %s31, 1
    %p80 = por %p78, %p79
    %p82 = scmp.ne.s32.totalorder %s65, %s81
    %p83 = scmp.eq.s32.totalorder %s31, 0
    %p84 = por %p82, %p83
    %s85 = ssub.s32 %s25, %s32
    %p86 = scmp.eq.s32.totalorder %s85, 0
    %s88 = sadd.s32 %s87, 1
    %s89 = scalar_select %p86, %s87, %s88
    %p92 = pneg %p86
    %p93 = scmp.eq.s32.totalorder %s25, 1
    %p94 = por %p92, %p93
    %p95 = scmp.ne.s32.totalorder %s87, %s90
    %p96 = scmp.eq.s32.totalorder %s25, 0
    %p97 = por %p95, %p96
    %p98 = scmp.ne.s32.totalorder %s87, %s90
    %p99 = scmp.eq.s32.totalorder %s30, 1
    %p100 = por %p98, %p99
    %p101 = scmp.ne.s32.totalorder %s90, %s91
    %p102 = scmp.eq.s32.totalorder %s30, 0
    %p103 = por %p101, %p102
    %p104 = scmp.ne.s32.totalorder %s90, %s91
    %p105 = scmp.eq.s32.totalorder %s31, 1
    %p106 = por %p104, %p105
    %p108 = scmp.ne.s32.totalorder %s91, %s107
    %p109 = scmp.eq.s32.totalorder %s31, 0
    %p110 = por %p108, %p109
    %s112 = sadd.s32 %s111, 1
    %p115 = scmp.eq.s32.totalorder %s25, 1
    %p116 = scmp.ne.s32.totalorder %s111, %s113
    %p117 = scmp.eq.s32.totalorder %s25, 0
    %p118 = por %p116, %p117
    %p119 = scmp.ne.s32.totalorder %s111, %s113
    %p120 = scmp.eq.s32.totalorder %s30, 1
    %p121 = por %p119, %p120
    %p122 = scmp.ne.s32.totalorder %s113, %s114
    %p123 = scmp.eq.s32.totalorder %s30, 0
    %p124 = por %p122, %p123
    %p125 = scmp.ne.s32.totalorder %s113, %s114
    %p126 = scmp.eq.s32.totalorder %s31, 1
    %p127 = por %p125, %p126
    %p129 = scmp.ne.s32.totalorder %s114, %s128
    %p130 = scmp.eq.s32.totalorder %s31, 0
    %p131 = por %p129, %p130
    %s133 = sadd.s32 %s132, 1
    %p136 = scmp.eq.s32.totalorder %s25, 1
    %p137 = scmp.ne.s32.totalorder %s132, %s134
    %p138 = scmp.eq.s32.totalorder %s25, 0
    %p139 = por %p137, %p138
    %p140 = scmp.ne.s32.totalorder %s132, %s134
    %p141 = scmp.eq.s32.totalorder %s30, 1
    %p142 = por %p140, %p141
    %p143 = scmp.ne.s32.totalorder %s134, %s135
    %p144 = scmp.eq.s32.totalorder %s30, 0
    %p145 = por %p143, %p144
    %p146 = scmp.ne.s32.totalorder %s134, %s135
    %p147 = scmp.eq.s32.totalorder %s31, 1
    %p148 = por %p146, %p147
    %p150 = scmp.ne.s32.totalorder %s135, %s149
    %p151 = scmp.eq.s32.totalorder %s31, 0
    %p152 = por %p150, %p151
    %s154 = sadd.s32 %s153, 1
    %p157 = scmp.eq.s32.totalorder %s25, 1
    %p158 = scmp.ne.s32.totalorder %s153, %s155
    %p159 = scmp.eq.s32.totalorder %s25, 0
    %p160 = por %p158, %p159
    %p161 = scmp.ne.s32.totalorder %s153, %s155
    %p162 = scmp.eq.s32.totalorder %s30, 1
    %p163 = por %p161, %p162
    %p164 = scmp.ne.s32.totalorder %s155, %s156
    %p165 = scmp.eq.s32.totalorder %s30, 0
    %p166 = por %p164, %p165
    %p167 = scmp.ne.s32.totalorder %s155, %s156
    %p168 = scmp.eq.s32.totalorder %s31, 1
    %p169 = por %p167, %p168
    %p171 = scmp.ne.s32.totalorder %s156, %s170
    %p172 = scmp.eq.s32.totalorder %s31, 0
    %p173 = por %p171, %p172
    %s175 = sadd.s32 %s174, 1
    %p178 = scmp.eq.s32.totalorder %s25, 1
    %p179 = scmp.ne.s32.totalorder %s174, %s176
    %p180 = scmp.eq.s32.totalorder %s25, 0
    %p181 = por %p179, %p180
    %p182 = scmp.ne.s32.totalorder %s174, %s176
    %p183 = scmp.eq.s32.totalorder %s30, 1
    %p184 = por %p182, %p183
    %p185 = scmp.ne.s32.totalorder %s176, %s177
    %p186 = scmp.eq.s32.totalorder %s30, 0
    %p187 = por %p185, %p186
    %p188 = scmp.ne.s32.totalorder %s176, %s177
    %p189 = scmp.eq.s32.totalorder %s31, 1
    %p190 = por %p188, %p189
    %p192 = scmp.ne.s32.totalorder %s177, %s191
    %p193 = scmp.eq.s32.totalorder %s31, 0
    %p194 = por %p192, %p193
    %s196 = sadd.s32 %s195, 1
    %p199 = scmp.eq.s32.totalorder %s25, 1
    %p200 = scmp.ne.s32.totalorder %s195, %s197
    %p201 = scmp.eq.s32.totalorder %s25, 0
    %p202 = por %p200, %p201
    %p203 = scmp.ne.s32.totalorder %s195, %s197
    %p204 = scmp.eq.s32.totalorder %s30, 1
    %p205 = por %p203, %p204
    %p206 = scmp.ne.s32.totalorder %s197, %s198
    %p207 = scmp.eq.s32.totalorder %s30, 0
    %p208 = por %p206, %p207
    %p209 = scmp.ne.s32.totalorder %s197, %s198
    %p210 = scmp.eq.s32.totalorder %s31, 1
    %p211 = por %p209, %p210
    %p213 = scmp.ne.s32.totalorder %s198, %s212
    %p214 = scmp.eq.s32.totalorder %s31, 0
    %p215 = por %p213, %p214
    %s217 = sadd.s32 %s216, 1
    %p220 = scmp.eq.s32.totalorder %s25, 1
    %p221 = scmp.ne.s32.totalorder %s216, %s218
    %p222 = scmp.eq.s32.totalorder %s25, 0
    %p223 = por %p221, %p222
    %p224 = scmp.ne.s32.totalorder %s216, %s218
    %p225 = scmp.eq.s32.totalorder %s30, 1
    %p226 = por %p224, %p225
    %p227 = scmp.ne.s32.totalorder %s218, %s219
    %p228 = scmp.eq.s32.totalorder %s30, 0
    %p229 = por %p227, %p228
    %p230 = scmp.ne.s32.totalorder %s218, %s219
    %p231 = scmp.eq.s32.totalorder %s31, 1
    %p232 = por %p230, %p231
    %p234 = scmp.ne.s32.totalorder %s219, %s233
    %p235 = scmp.eq.s32.totalorder %s31, 0
    %p236 = por %p234, %p235
    %s238 = sadd.s32 %s237, 1
    %p241 = scmp.eq.s32.totalorder %s25, 1
    %p242 = scmp.ne.s32.totalorder %s237, %s239
    %p243 = scmp.eq.s32.totalorder %s25, 0
    %p244 = por %p242, %p243
    %p245 = scmp.ne.s32.totalorder %s237, %s239
    %p246 = scmp.eq.s32.totalorder %s30, 1
    %p247 = por %p245, %p246
    %p248 = scmp.ne.s32.totalorder %s239, %s240
    %p249 = scmp.eq.s32.totalorder %s30, 0
    %p250 = por %p248, %p249
    %p251 = scmp.ne.s32.totalorder %s239, %s240
    %p252 = scmp.eq.s32.totalorder %s31, 1
    %p253 = por %p251, %p252
    %p255 = scmp.ne.s32.totalorder %s240, %s254
    %p256 = scmp.eq.s32.totalorder %s31, 0
    %p257 = por %p255, %p256
    %s259 = sadd.s32 %s258, 1
    %p262 = scmp.eq.s32.totalorder %s25, 1
    %p263 = scmp.ne.s32.totalorder %s258, %s260
    %p264 = scmp.eq.s32.totalorder %s25, 0
    %p265 = por %p263, %p264
    %p266 = scmp.ne.s32.totalorder %s258, %s260
    %p267 = scmp.eq.s32.totalorder %s30, 1
    %p268 = por %p266, %p267
    %p269 = scmp.ne.s32.totalorder %s260, %s261
    %p270 = scmp.eq.s32.totalorder %s30, 0
    %p271 = por %p269, %p270
    %p272 = scmp.ne.s32.totalorder %s260, %s261
    %p273 = scmp.eq.s32.totalorder %s31, 1
    %p274 = por %p272, %p273
    %p276 = scmp.ne.s32.totalorder %s261, %s275
    %p277 = scmp.eq.s32.totalorder %s31, 0
    %p278 = por %p276, %p277
    %s280 = sadd.s32 %s279, 1
    %p283 = scmp.eq.s32.totalorder %s25, 1
    %p284 = scmp.ne.s32.totalorder %s279, %s281
    %p285 = scmp.eq.s32.totalorder %s25, 0
    %p286 = por %p284, %p285
    %p287 = scmp.ne.s32.totalorder %s279, %s281
    %p288 = scmp.eq.s32.totalorder %s30, 1
    %p289 = por %p287, %p288
    %p290 = scmp.ne.s32.totalorder %s281, %s282
    %p291 = scmp.eq.s32.totalorder %s30, 0
    %p292 = por %p290, %p291
    %p293 = scmp.ne.s32.totalorder %s281, %s282
    %p294 = scmp.eq.s32.totalorder %s31, 1
    %p295 = por %p293, %p294
    %p297 = scmp.ne.s32.totalorder %s282, %s296
    %p298 = scmp.eq.s32.totalorder %s31, 0
    %p299 = por %p297, %p298
    %s301 = sadd.s32 %s300, 1
    %p304 = scmp.eq.s32.totalorder %s25, 1
    %p305 = scmp.ne.s32.totalorder %s300, %s302
    %p306 = scmp.eq.s32.totalorder %s25, 0
    %p307 = por %p305, %p306
    %p308 = scmp.ne.s32.totalorder %s300, %s302
    %p309 = scmp.eq.s32.totalorder %s30, 1
    %p310 = por %p308, %p309
    %p311 = scmp.ne.s32.totalorder %s302, %s303
    %p312 = scmp.eq.s32.totalorder %s30, 0
    %p313 = por %p311, %p312
    %p314 = scmp.ne.s32.totalorder %s302, %s303
    %p315 = scmp.eq.s32.totalorder %s31, 1
    %p316 = por %p314, %p315
    %p318 = scmp.ne.s32.totalorder %s303, %s317
    %p319 = scmp.eq.s32.totalorder %s31, 0
    %p320 = por %p318, %p319
    %s322 = sadd.s32 %s321, 1
    %p325 = scmp.eq.s32.totalorder %s25, 1
    %p326 = scmp.ne.s32.totalorder %s321, %s323
    %p327 = scmp.eq.s32.totalorder %s25, 0
    %p328 = por %p326, %p327
    %p329 = scmp.ne.s32.totalorder %s321, %s323
    %p330 = scmp.eq.s32.totalorder %s30, 1
    %p331 = por %p329, %p330
    %p332 = scmp.ne.s32.totalorder %s323, %s324
    %p333 = scmp.eq.s32.totalorder %s30, 0
    %p334 = por %p332, %p333
    %p335 = scmp.ne.s32.totalorder %s323, %s324
    %p336 = scmp.eq.s32.totalorder %s31, 1
    %p337 = por %p335, %p336
    %p339 = scmp.ne.s32.totalorder %s324, %s338
    %p340 = scmp.eq.s32.totalorder %s31, 0
    %p341 = por %p339, %p340
    %s343 = sadd.s32 %s342, 1
    %p346 = scmp.eq.s32.totalorder %s25, 1
    %p347 = scmp.ne.s32.totalorder %s342, %s344
    %p348 = scmp.eq.s32.totalorder %s25, 0
    %p349 = por %p347, %p348
    %p350 = scmp.ne.s32.totalorder %s342, %s344
    %p351 = scmp.eq.s32.totalorder %s30, 1
    %p352 = por %p350, %p351
    %p353 = scmp.ne.s32.totalorder %s344, %s345
    %p354 = scmp.eq.s32.totalorder %s30, 0
    %p355 = por %p353, %p354
    %p356 = scmp.ne.s32.totalorder %s344, %s345
    %p357 = scmp.eq.s32.totalorder %s31, 1
    %p358 = por %p356, %p357
    %p360 = scmp.ne.s32.totalorder %s345, %s359
    %p361 = scmp.eq.s32.totalorder %s31, 0
    %p362 = por %p360, %p361
    %s364 = sadd.s32 %s363, 1
    %p367 = scmp.eq.s32.totalorder %s25, 1
    %p368 = scmp.ne.s32.totalorder %s363, %s365
    %p369 = scmp.eq.s32.totalorder %s25, 0
    %p370 = por %p368, %p369
    %p371 = scmp.ne.s32.totalorder %s363, %s365
    %p372 = scmp.eq.s32.totalorder %s30, 1
    %p373 = por %p371, %p372
    %p374 = scmp.ne.s32.totalorder %s365, %s366
    %p375 = scmp.eq.s32.totalorder %s30, 0
    %p376 = por %p374, %p375
    %p377 = scmp.ne.s32.totalorder %s365, %s366
    %p378 = scmp.eq.s32.totalorder %s31, 1
    %p379 = por %p377, %p378
    %p381 = scmp.ne.s32.totalorder %s366, %s380
    %p382 = scmp.eq.s32.totalorder %s31, 0
    %p383 = por %p381, %p382
    %s385 = sadd.s32 %s384, 1
    %p388 = scmp.eq.s32.totalorder %s25, 1
    %p389 = scmp.ne.s32.totalorder %s384, %s386
    %p390 = scmp.eq.s32.totalorder %s25, 0
    %p391 = por %p389, %p390
    %p392 = scmp.ne.s32.totalorder %s384, %s386
    %p393 = scmp.eq.s32.totalorder %s30, 1
    %p394 = por %p392, %p393
    %p395 = scmp.ne.s32.totalorder %s386, %s387
    %p396 = scmp.eq.s32.totalorder %s30, 0
    %p397 = por %p395, %p396
    %p398 = scmp.ne.s32.totalorder %s386, %s387
    %p399 = scmp.eq.s32.totalorder %s31, 1
    %p400 = por %p398, %p399
    %p402 = scmp.ne.s32.totalorder %s387, %s401
    %p403 = scmp.eq.s32.totalorder %s31, 0
    %p404 = por %p402, %p403
    %s405 = ssub.s32 %s25, %s32
    %p406 = scmp.eq.s32.totalorder %s405, 0
    %s408 = sadd.s32 %s407, 1
    %s409 = scalar_select %p406, %s407, %s408
    %p412 = pneg %p406
    %p413 = scmp.eq.s32.totalorder %s25, 1
    %p414 = por %p412, %p413
    %p415 = scmp.ne.s32.totalorder %s407, %s410
    %p416 = scmp.eq.s32.totalorder %s25, 0
    %p417 = por %p415, %p416
    %p418 = scmp.ne.s32.totalorder %s407, %s410
    %p419 = scmp.eq.s32.totalorder %s30, 1
    %p420 = por %p418, %p419
    %p421 = scmp.ne.s32.totalorder %s410, %s411
    %p422 = scmp.eq.s32.totalorder %s30, 0
    %p423 = por %p421, %p422
    %p424 = scmp.ne.s32.totalorder %s410, %s411
    %p425 = scmp.eq.s32.totalorder %s31, 1
    %p426 = por %p424, %p425
    %p428 = scmp.ne.s32.totalorder %s411, %s427
    %p429 = scmp.eq.s32.totalorder %s31, 0
    %p430 = por %p428, %p429
    %s431 = ssub.s32 %s25, %s32
    %p432 = scmp.eq.s32.totalorder %s431, 0
    %s434 = sadd.s32 %s433, 1
    %s435 = scalar_select %p432, %s433, %s434
    %p438 = pneg %p432
    %p439 = scmp.eq.s32.totalorder %s25, 1
    %p440 = por %p438, %p439
    %p441 = scmp.ne.s32.totalorder %s433, %s436
    %p442 = scmp.eq.s32.totalorder %s25, 0
    %p443 = por %p441, %p442
    %p444 = scmp.ne.s32.totalorder %s433, %s436
    %p445 = scmp.eq.s32.totalorder %s30, 1
    %p446 = por %p444, %p445
    %p447 = scmp.ne.s32.totalorder %s436, %s437
    %p448 = scmp.eq.s32.totalorder %s30, 0
    %p449 = por %p447, %p448
    %p450 = scmp.ne.s32.totalorder %s436, %s437
    %p451 = scmp.eq.s32.totalorder %s31, 1
    %p452 = por %p450, %p451
    %p454 = scmp.ne.s32.totalorder %s437, %s453
    %p455 = scmp.eq.s32.totalorder %s31, 0
    %p456 = por %p454, %p455
    %p457 = scmp.le.s32.totalorder 1, %s25
    %p458 = scmp.lt.s32.totalorder %s25, 3
    %p459 = pnand %p457, %p458
    %p460 = pneg %p459
    // Predicated region
    $region9: #{discert_actor_forward.1} parent=5 // pred_check
      _
    $region10: #{discert_actor_forward.1} parent=5 // pred_check_branch
      %462 = sbr.rel (%p459) target = $region12
    $region11: #{discert_actor_forward.1} parent=5 // pred_region
      %s463 = ssub.s32 %s25, 1
      // Predicated region
      $region13: #{discert_actor_forward.1} parent=11 // pred_check
        %p464 = pneg %p124
      $region14: #{discert_actor_forward.1} parent=11 // pred_check_branch
        %466 = sbr.rel (%p464) target = $region16
      $region15: #{discert_actor_forward.1} parent=11 // pred_region
        _
      $region16: #{discert_actor_forward.1} parent=11 // pred_fallthru
        _
      // Predicated region
      $region17: #{discert_actor_forward.1} parent=11 // pred_check
        %p467 = pneg %p145
      $region18: #{discert_actor_forward.1} parent=11 // pred_check_branch
        %469 = sbr.rel (%p467) target = $region20
      $region19: #{discert_actor_forward.1} parent=11 // pred_region
        _
      $region20: #{discert_actor_forward.1} parent=11 // pred_fallthru
        _
      // Predicated region
      $region21: #{discert_actor_forward.1} parent=11 // pred_check
        %p470 = pneg %p166
      $region22: #{discert_actor_forward.1} parent=11 // pred_check_branch
        %472 = sbr.rel (%p470) target = $region24
      $region23: #{discert_actor_forward.1} parent=11 // pred_region
        _
      $region24: #{discert_actor_forward.1} parent=11 // pred_fallthru
        _
      // Predicated region
      $region25: #{discert_actor_forward.1} parent=11 // pred_check
        %p473 = pneg %p187
      $region26: #{discert_actor_forward.1} parent=11 // pred_check_branch
        %475 = sbr.rel (%p473) target = $region28
      $region27: #{discert_actor_forward.1} parent=11 // pred_region
        _
      $region28: #{discert_actor_forward.1} parent=11 // pred_fallthru
        _
      // Predicated region
      $region29: #{discert_actor_forward.1} parent=11 // pred_check
        %p476 = pneg %p208
      $region30: #{discert_actor_forward.1} parent=11 // pred_check_branch
        %478 = sbr.rel (%p476) target = $region32
      $region31: #{discert_actor_forward.1} parent=11 // pred_region
        _
      $region32: #{discert_actor_forward.1} parent=11 // pred_fallthru
        _
      // Predicated region
      $region33: #{discert_actor_forward.1} parent=11 // pred_check
        %p479 = pneg %p229
      $region34: #{discert_actor_forward.1} parent=11 // pred_check_branch
        %481 = sbr.rel (%p479) target = $region36
      $region35: #{discert_actor_forward.1} parent=11 // pred_region
        _
      $region36: #{discert_actor_forward.1} parent=11 // pred_fallthru
        _
      // Predicated region
      $region37: #{discert_actor_forward.1} parent=11 // pred_check
        %p482 = pneg %p250
      $region38: #{discert_actor_forward.1} parent=11 // pred_check_branch
        %484 = sbr.rel (%p482) target = $region40
      $region39: #{discert_actor_forward.1} parent=11 // pred_region
        _
      $region40: #{discert_actor_forward.1} parent=11 // pred_fallthru
        _
      // Predicated region
      $region41: #{discert_actor_forward.1} parent=11 // pred_check
        %p485 = pneg %p271
      $region42: #{discert_actor_forward.1} parent=11 // pred_check_branch
        %487 = sbr.rel (%p485) target = $region44
      $region43: #{discert_actor_forward.1} parent=11 // pred_region
        _
      $region44: #{discert_actor_forward.1} parent=11 // pred_fallthru
        _
      // Predicated region
      $region45: #{discert_actor_forward.1} parent=11 // pred_check
        %p488 = pneg %p292
      $region46: #{discert_actor_forward.1} parent=11 // pred_check_branch
        %490 = sbr.rel (%p488) target = $region48
      $region47: #{discert_actor_forward.1} parent=11 // pred_region
        _
      $region48: #{discert_actor_forward.1} parent=11 // pred_fallthru
        _
      // Predicated region
      $region49: #{discert_actor_forward.1} parent=11 // pred_check
        %p491 = pneg %p313
      $region50: #{discert_actor_forward.1} parent=11 // pred_check_branch
        %493 = sbr.rel (%p491) target = $region52
      $region51: #{discert_actor_forward.1} parent=11 // pred_region
        _
      $region52: #{discert_actor_forward.1} parent=11 // pred_fallthru
        _
      // Predicated region
      $region53: #{discert_actor_forward.1} parent=11 // pred_check
        %p494 = pneg %p334
      $region54: #{discert_actor_forward.1} parent=11 // pred_check_branch
        %496 = sbr.rel (%p494) target = $region56
      $region55: #{discert_actor_forward.1} parent=11 // pred_region
        _
      $region56: #{discert_actor_forward.1} parent=11 // pred_fallthru
        _
      // Predicated region
      $region57: #{discert_actor_forward.1} parent=11 // pred_check
        %p497 = pneg %p355
      $region58: #{discert_actor_forward.1} parent=11 // pred_check_branch
        %499 = sbr.rel (%p497) target = $region60
      $region59: #{discert_actor_forward.1} parent=11 // pred_region
        _
      $region60: #{discert_actor_forward.1} parent=11 // pred_fallthru
        _
      // Predicated region
      $region61: #{discert_actor_forward.1} parent=11 // pred_check
        %p500 = pneg %p376
      $region62: #{discert_actor_forward.1} parent=11 // pred_check_branch
        %502 = sbr.rel (%p500) target = $region64
      $region63: #{discert_actor_forward.1} parent=11 // pred_region
        _
      $region64: #{discert_actor_forward.1} parent=11 // pred_fallthru
        _
      // Predicated region
      $region65: #{discert_actor_forward.1} parent=11 // pred_check
        %p503 = pneg %p397
      $region66: #{discert_actor_forward.1} parent=11 // pred_check_branch
        %505 = sbr.rel (%p503) target = $region68
      $region67: #{discert_actor_forward.1} parent=11 // pred_region
        _
      $region68: #{discert_actor_forward.1} parent=11 // pred_fallthru
        _
    $region12: #{discert_actor_forward.1} parent=5 // pred_fallthru
      _
    %p506 = scmp.lt.s32.totalorder %s25, 2
    // Predicated region
    $region69: #{discert_actor_forward.1} parent=5 // pred_check
      %p507 = pneg %p506
    $region70: #{discert_actor_forward.1} parent=5 // pred_check_branch
      %509 = sbr.rel (%p507) target = $region72
    $region71: #{discert_actor_forward.1} parent=5 // pred_region
      // Predicated region
      $region73: #{discert_actor_forward.1} parent=71 // pred_check
        %p510 = pneg %p45
      $region74: #{discert_actor_forward.1} parent=71 // pred_check_branch
        %512 = sbr.rel (%p510) target = $region76
      $region75: #{discert_actor_forward.1} parent=71 // pred_region
        %s513 = smul.u32 4, %s25
        %p514 = scmp.lt.s32.totalorder %s513, 7
        %s515 = scalar_select %p514, %s513, 7
        %s516 = smul.addr %s515, 4
        %s517 = scalar_lea.vmem %s0, %s516
        %s518 = smul.u32 4, %s25
      $region76: #{discert_actor_forward.1} parent=71 // pred_fallthru
        _
      // Predicated region
      $region77: #{discert_actor_forward.1} parent=71 // pred_check
        %p519 = pneg %p71
      $region78: #{discert_actor_forward.1} parent=71 // pred_check_branch
        %521 = sbr.rel (%p519) target = $region80
      $region79: #{discert_actor_forward.1} parent=71 // pred_region
        %s522 = smul.u32 4, %s25
        %p523 = scmp.lt.s32.totalorder %s522, 7
        %s524 = scalar_select %p523, %s522, 7
        %s525 = smul.addr %s524, 8
        %s526 = scalar_lea.vmem %s1, %s525
        %s527 = smul.u32 4, %s25
      $region80: #{discert_actor_forward.1} parent=71 // pred_fallthru
        _
      // Predicated region
      $region81: #{discert_actor_forward.1} parent=71 // pred_check
        %p528 = pneg %p97
      $region82: #{discert_actor_forward.1} parent=71 // pred_check_branch
        %530 = sbr.rel (%p528) target = $region84
      $region83: #{discert_actor_forward.1} parent=71 // pred_region
        %s531 = smul.u32 4, %s25
        %p532 = scmp.lt.s32.totalorder %s531, 7
        %s533 = scalar_select %p532, %s531, 7
        %s534 = smul.addr %s533, 8
        %s535 = scalar_lea.vmem %s2, %s534
        %s536 = smul.u32 4, %s25
      $region84: #{discert_actor_forward.1} parent=71 // pred_fallthru
        _
    $region72: #{discert_actor_forward.1} parent=5 // pred_fallthru
      _
    %p537 = scmp.le.s32.totalorder 1, %s25
    %p538 = scmp.lt.s32.totalorder %s25, 3
    %p539 = pnand %p537, %p538
    %p540 = pneg %p539
    // Predicated region
    $region85: #{discert_actor_forward.1} parent=5 // pred_check
      _
    $region86: #{discert_actor_forward.1} parent=5 // pred_check_branch
      %542 = sbr.rel (%p539) target = $region88
    $region87: #{discert_actor_forward.1} parent=5 // pred_region
      %s543 = ssub.s32 %s25, 1
      %s544 = smul.u32 4, %s30
      %p545 = scmp.lt.s32.totalorder %s544, 7
      %s546 = scalar_select %p545, %s544, 7
      %s547 = smul.addr %s546, 4
      %s548 = scalar_lea.vmem %s0, %s547
      %p549 = pneg %p51
      %p550 = pneg %p48
      %s551 = smul.u32 4, %s30
      %p552 = scmp.lt.s32.totalorder %s551, 7
      %s553 = scalar_select %p552, %s551, 7
      %s554 = smul.addr %s553, 8
      %s555 = scalar_lea.vmem %s1, %s554
      %p556 = pneg %p77
      %p557 = pneg %p74
      %s558 = smul.u32 4, %s30
      %p559 = scmp.lt.s32.totalorder %s558, 7
      %s560 = scalar_select %p559, %s558, 7
      %s561 = smul.addr %s560, 8
      %s562 = scalar_lea.vmem %s2, %s561
      %p563 = pneg %p103
      %p564 = pneg %p100
      %p565 = pneg %p124
      %p566 = pneg %p121
      %p567 = pneg %p145
      %p568 = pneg %p142
      %p569 = pneg %p166
      %p570 = pneg %p163
      %p571 = pneg %p187
      %p572 = pneg %p184
      %p573 = pneg %p208
      %p574 = pneg %p205
      %p575 = pneg %p229
      %p576 = pneg %p226
      %p577 = pneg %p250
      %p578 = pneg %p247
      %p579 = pneg %p271
      %p580 = pneg %p268
      %p581 = pneg %p292
      %p582 = pneg %p289
      %p583 = pneg %p313
      %p584 = pneg %p310
      %p585 = pneg %p334
      %p586 = pneg %p331
      %p587 = pneg %p355
      %p588 = pneg %p352
      %p589 = pneg %p376
      %p590 = pneg %p373
      %p591 = pneg %p397
      %p592 = pneg %p394
      %p593 = pneg %p423
      %p594 = pneg %p420
      %s595 = smul.u32 4, %s30
      %p596 = scmp.lt.s32.totalorder %s595, 7
      %s597 = scalar_select %p596, %s595, 7
      %s598 = smul.addr %s597, 4
      %s599 = scalar_lea.vmem %s17, %s598
      %p600 = pneg %p449
      %p601 = pneg %p446
      %s602 = smul.u32 4, %s30
      %p603 = scmp.lt.s32.totalorder %s602, 7
      %s604 = scalar_select %p603, %s602, 7
      %s605 = smul.addr %s604, 8
      %s606 = scalar_lea.vmem %s18, %s605
      %s607 = smul.u32 4, %s30
      %p608 = scmp.lt.s32.totalorder %s607, 7
      %s609 = scalar_select %p608, %s607, 7
      %s610 = smul.addr %s609, 4
      %s611 = scalar_lea.vmem %s0, %s610
      %s612 = smul.u32 4, %s30
      %s613 = smul.u32 4, %s30
      %p614 = scmp.lt.s32.totalorder %s613, 7
      %s615 = scalar_select %p614, %s613, 7
      %s616 = smul.addr %s615, 8
      %s617 = scalar_lea.vmem %s1, %s616
      %s618 = smul.u32 4, %s30
      %s619 = smul.u32 4, %s30
      %p620 = scmp.lt.s32.totalorder %s619, 7
      %s621 = scalar_select %p620, %s619, 7
      %s622 = smul.addr %s621, 8
      %s623 = scalar_lea.vmem %s2, %s622
      %s624 = smul.u32 4, %s30
      %s625 = smul.u32 4, %s30
      %p626 = scmp.lt.s32.totalorder %s625, 7
      %s627 = scalar_select %p626, %s625, 7
      %s628 = smul.addr %s627, 4
      %s629 = scalar_lea.vmem %s17, %s628
      %s630 = smul.u32 4, %s30
      %s631 = smul.u32 4, %s30
      %p632 = scmp.lt.s32.totalorder %s631, 7
      %s633 = scalar_select %p632, %s631, 7
      %s634 = smul.addr %s633, 8
      %s635 = scalar_lea.vmem %s18, %s634
      %s636 = smul.u32 4, %s30
      %v638 = vld [vmem:[%s611] sm:$0xf]
      %v639 = vld [vmem:[%s611 + $0x4] sm:$0xf]
      %v640 = vld [vmem:[%s611 + $0x8] sm:$0xf]
      %v641 = vld [vmem:[%s611 + $0xc] sm:$0xf]
      %v642 = vld [vmem:[%s3] sm:$0xf]
      %v643 = vld [vmem:[%s3 + $0x4] sm:$0xf]
      %v644 = vld [vmem:[%s3 + $0x8] sm:$0xf]
      %v645 = vld [vmem:[%s3 + $0xc] sm:$0xf]
      %v646 = vld [vmem:[%s4] sm:$0x1]
      %v648 = vlaneseq
      %v649 = vshrl.u32 %v648, 7
      %v650 = vsub.s32 0, %v649
      %v651 = vrot.slane %v646, %v650
      %v657 = vunpack.c.l.b16 %v638
      %v658 = vunpack.c.l.b16 %v639
      %v659 = vunpack.c.l.b16 %v640
      %v660 = vunpack.c.l.b16 %v641
      %v661 = vpack.c.b16 %v658, %v657
      %v662 = vpack.c.b16 %v660, %v659
      %v667 = vunpack.c.l.b16 %v642
      %v668 = vunpack.c.l.b16 %v643
      %v669 = vunpack.c.l.b16 %v644
      %v670 = vunpack.c.l.b16 %v645
      %v671 = vpack.c.b16 %v668, %v667
      %v672 = vpack.c.b16 %v670, %v669
      %vm675 = vcmask 261120
      %v677 = vsel %vm675, %v661, 0
      %v680 = vsel %vm675, %v662, 0
      %682 = vmatprep.subr.bf16.mxu0 0
      %683 = vmatpush1.bf16.msra.mxu0 %v671
      %684 = vmatprep.subr.bf16.mxu0 0
      %685 = vmatpush1.bf16.msra.mxu0 %v672
      %686 = vmatprep.subr.bf16.mxu0 0
      %687 = vmatpush1.bf16.msra.mxu0 0
      %688 = vmatprep.subr.bf16.mxu0 0
      %689 = vmatpush1.bf16.msra.mxu0 0
      %690 = vmatprep.subr.bf16.mxu0 0
      %691 = vmatpush1.bf16.msra.mxu0 0
      %692 = vmatprep.subr.bf16.mxu0 0
      %693 = vmatpush1.bf16.msra.mxu0 0
      %694 = vmatprep.subr.bf16.mxu0 0
      %695 = vmatpush1.bf16.msra.mxu0 0
      %696 = vmatprep.subr.bf16.mxu0 0
      %697 = vmatpush1.bf16.msra.mxu0 0
      %698 = vmatprep.subr.bf16.mxu0 0
      %699 = vmatpush1.bf16.msra.mxu0 0
      %700 = vmatprep.subr.bf16.mxu0 0
      %701 = vmatpush1.bf16.msra.mxu0 0
      %702 = vmatprep.subr.bf16.mxu0 0
      %703 = vmatpush1.bf16.msra.mxu0 0
      %704 = vmatprep.subr.bf16.mxu0 0
      %705 = vmatpush1.bf16.msra.mxu0 0
      %706 = vmatprep.subr.bf16.mxu0 0
      %707 = vmatpush1.bf16.msra.mxu0 0
      %708 = vmatprep.subr.bf16.mxu0 0
      %709 = vmatpush1.bf16.msra.mxu0 0
      %710 = vmatprep.subr.bf16.mxu0 0
      %711 = vmatpush1.bf16.msra.mxu0 0
      %712 = vmatprep.subr.bf16.mxu0 0
      %713 = vmatpush1.bf16.msra.mxu0 0
      %714 = vmatprep.mubr.bf16.mxu0 0
      %715 = vmatmul.mubr.bf16.gmra.mrb[0].mxu0 %v677
      %v716 = vpop.f32.mrb[0].mxu0
      %v717 = vadd.f32 %v651, %v716
      %v718 = vpop.f32.mrb[0].mxu0
      %v719 = vpop.f32.mrb[0].mxu0
      %v720 = vadd.f32 %v651, %v719
      %v721 = vpop.f32.mrb[0].mxu0
      %722 = vmatprep.mubr.bf16.mxu0 0
      %723 = vmatmul.mubr.bf16.gmra.mrb[0].mxu0 %v680
      %v724 = vpop.f32.mrb[0].mxu0
      %v725 = vadd.f32 %v651, %v724
      %v726 = vpop.f32.mrb[0].mxu0
      %v727 = vpop.f32.mrb[0].mxu0
      %v728 = vadd.f32 %v651, %v727
      %v729 = vpop.f32.mrb[0].mxu0
      %730 = vdwg.mxu0
      %v731 = vmax.f32 %v717, 0.0
      %v732 = vmax.f32 %v720, 0.0
      %v733 = vmax.f32 %v725, 0.0
      %v734 = vmax.f32 %v728, 0.0
      %v735 = vpack.c.bf16 %v732, %v731
      %v736 = vpack.c.bf16 %v734, %v733
      %v737 = vld [vmem:[%s5] sm:$0xf]
      %v738 = vld [vmem:[%s5 + $0x4] sm:$0xf]
      %v739 = vld [vmem:[%s5 + $0x8] sm:$0xf]
      %v740 = vld [vmem:[%s5 + $0xc] sm:$0xf]
      %v741 = vld [vmem:[%s5 + $0x10] sm:$0xf]
      %v742 = vld [vmem:[%s5 + $0x14] sm:$0xf]
      %v743 = vld [vmem:[%s5 + $0x18] sm:$0xf]
      %v744 = vld [vmem:[%s5 + $0x1c] sm:$0xf]
      %v745 = vld [vmem:[%s6] sm:$0x1]
      %v747 = vlaneseq
      %v748 = vshrl.u32 %v747, 7
      %v749 = vsub.s32 0, %v748
      %v750 = vrot.slane %v745, %v749
      %v760 = vunpack.c.l.b16 %v737
      %v761 = vunpack.c.l.b16 %v738
      %v762 = vunpack.c.l.b16 %v739
      %v763 = vunpack.c.l.b16 %v740
      %v764 = vunpack.c.l.b16 %v741
      %v765 = vunpack.c.l.b16 %v742
      %v766 = vunpack.c.l.b16 %v743
      %v767 = vunpack.c.l.b16 %v744
      %v768 = vpack.c.b16 %v761, %v760
      %v769 = vpack.c.b16 %v763, %v762
      %v770 = vpack.c.b16 %v765, %v764
      %v771 = vpack.c.b16 %v767, %v766
      %vm776 = vcmask 523264
      %v778 = vsel %vm776, %v735, 0
      %v781 = vsel %vm776, %v736, 0
      %783 = vmatprep.subr.bf16.mxu0 0
      %784 = vmatpush1.bf16.msra.mxu0 %v768
      %785 = vmatprep.subr.bf16.mxu0 0
      %786 = vmatpush1.bf16.msra.mxu0 %v769
      %787 = vmatprep.subr.bf16.mxu0 0
      %788 = vmatpush1.bf16.msra.mxu0 %v770
      %789 = vmatprep.subr.bf16.mxu0 0
      %790 = vmatpush1.bf16.msra.mxu0 %v771
      %791 = vmatprep.subr.bf16.mxu0 0
      %792 = vmatpush1.bf16.msra.mxu0 0
      %793 = vmatprep.subr.bf16.mxu0 0
      %794 = vmatpush1.bf16.msra.mxu0 0
      %795 = vmatprep.subr.bf16.mxu0 0
      %796 = vmatpush1.bf16.msra.mxu0 0
      %797 = vmatprep.subr.bf16.mxu0 0
      %798 = vmatpush1.bf16.msra.mxu0 0
      %799 = vmatprep.subr.bf16.mxu0 0
      %800 = vmatpush1.bf16.msra.mxu0 0
      %801 = vmatprep.subr.bf16.mxu0 0
      %802 = vmatpush1.bf16.msra.mxu0 0
      %803 = vmatprep.subr.bf16.mxu0 0
      %804 = vmatpush1.bf16.msra.mxu0 0
      %805 = vmatprep.subr.bf16.mxu0 0
      %806 = vmatpush1.bf16.msra.mxu0 0
      %807 = vmatprep.subr.bf16.mxu0 0
      %808 = vmatpush1.bf16.msra.mxu0 0
      %809 = vmatprep.subr.bf16.mxu0 0
      %810 = vmatpush1.bf16.msra.mxu0 0
      %811 = vmatprep.subr.bf16.mxu0 0
      %812 = vmatpush1.bf16.msra.mxu0 0
      %813 = vmatprep.subr.bf16.mxu0 0
      %814 = vmatpush1.bf16.msra.mxu0 0
      %815 = vmatprep.mubr.bf16.mxu0 0
      %816 = vmatmul.mubr.bf16.gmra.mrb[0].mxu0 %v778
      %v817 = vpop.f32.mrb[0].mxu0
      %v818 = vadd.f32 %v750, %v817
      %v819 = vpop.f32.mrb[0].mxu0
      %v820 = vpop.f32.mrb[0].mxu0
      %v821 = vadd.f32 %v750, %v820
      %v822 = vpop.f32.mrb[0].mxu0
      %823 = vmatprep.mubr.bf16.mxu0 0
      %824 = vmatmul.mubr.bf16.gmra.mrb[0].mxu0 %v781
      %v825 = vpop.f32.mrb[0].mxu0
      %v826 = vadd.f32 %v750, %v825
      %v827 = vpop.f32.mrb[0].mxu0
      %v828 = vpop.f32.mrb[0].mxu0
      %v829 = vadd.f32 %v750, %v828
      %v830 = vpop.f32.mrb[0].mxu0
      %831 = vdwg.mxu0
      %v832 = vmax.f32 %v818, 0.0
      %v833 = vmax.f32 %v821, 0.0
      %v834 = vmax.f32 %v826, 0.0
      %v835 = vmax.f32 %v829, 0.0
      %v836 = vpack.c.bf16 %v833, %v832
      %v837 = vpack.c.bf16 %v835, %v834
      %v838 = vld [vmem:[%s7] sm:$0xf]
      %v839 = vld [vmem:[%s7 + $0x4] sm:$0xf]
      %v840 = vld [vmem:[%s7 + $0x8] sm:$0xf]
      %v841 = vld [vmem:[%s7 + $0xc] sm:$0xf]
      %v842 = vld [vmem:[%s7 + $0x10] sm:$0xf]
      %v843 = vld [vmem:[%s7 + $0x14] sm:$0xf]
      %v844 = vld [vmem:[%s7 + $0x18] sm:$0xf]
      %v845 = vld [vmem:[%s7 + $0x1c] sm:$0xf]
      %v846 = vld [vmem:[%s8] sm:$0x1]
      %v848 = vlaneseq
      %v849 = vshrl.u32 %v848, 7
      %v850 = vsub.s32 0, %v849
      %v851 = vrot.slane %v846, %v850
      %v861 = vunpack.c.l.b16 %v838
      %v862 = vunpack.c.l.b16 %v839
      %v863 = vunpack.c.l.b16 %v840
      %v864 = vunpack.c.l.b16 %v841
      %v865 = vunpack.c.l.b16 %v842
      %v866 = vunpack.c.l.b16 %v843
      %v867 = vunpack.c.l.b16 %v844
      %v868 = vunpack.c.l.b16 %v845
      %v869 = vpack.c.b16 %v862, %v861
      %v870 = vpack.c.b16 %v864, %v863
      %v871 = vpack.c.b16 %v866, %v865
      %v872 = vpack.c.b16 %v868, %v867
      %v878 = vsel %vm776, %v836, 0
      %v881 = vsel %vm776, %v837, 0
      %883 = vmatprep.subr.bf16.mxu0 0
      %884 = vmatpush1.bf16.msra.mxu0 %v869
      %885 = vmatprep.subr.bf16.mxu0 0
      %886 = vmatpush1.bf16.msra.mxu0 %v870
      %887 = vmatprep.subr.bf16.mxu0 0
      %888 = vmatpush1.bf16.msra.mxu0 %v871
      %889 = vmatprep.subr.bf16.mxu0 0
      %890 = vmatpush1.bf16.msra.mxu0 %v872
      %891 = vmatprep.subr.bf16.mxu0 0
      %892 = vmatpush1.bf16.msra.mxu0 0
      %893 = vmatprep.subr.bf16.mxu0 0
      %894 = vmatpush1.bf16.msra.mxu0 0
      %895 = vmatprep.subr.bf16.mxu0 0
      %896 = vmatpush1.bf16.msra.mxu0 0
      %897 = vmatprep.subr.bf16.mxu0 0
      %898 = vmatpush1.bf16.msra.mxu0 0
      %899 = vmatprep.subr.bf16.mxu0 0
      %900 = vmatpush1.bf16.msra.mxu0 0
      %901 = vmatprep.subr.bf16.mxu0 0
      %902 = vmatpush1.bf16.msra.mxu0 0
      %903 = vmatprep.subr.bf16.mxu0 0
      %904 = vmatpush1.bf16.msra.mxu0 0
      %905 = vmatprep.subr.bf16.mxu0 0
      %906 = vmatpush1.bf16.msra.mxu0 0
      %907 = vmatprep.subr.bf16.mxu0 0
      %908 = vmatpush1.bf16.msra.mxu0 0
      %909 = vmatprep.subr.bf16.mxu0 0
      %910 = vmatpush1.bf16.msra.mxu0 0
      %911 = vmatprep.subr.bf16.mxu0 0
      %912 = vmatpush1.bf16.msra.mxu0 0
      %913 = vmatprep.subr.bf16.mxu0 0
      %914 = vmatpush1.bf16.msra.mxu0 0
      %915 = vmatprep.mubr.bf16.mxu0 0
      %916 = vmatmul.mubr.bf16.gmra.mrb[0].mxu0 %v878
      %v917 = vpop.f32.mrb[0].mxu0
      %v918 = vadd.f32 %v851, %v917
      %v919 = vpop.f32.mrb[0].mxu0
      %v920 = vpop.f32.mrb[0].mxu0
      %v921 = vadd.f32 %v851, %v920
      %v922 = vpop.f32.mrb[0].mxu0
      %923 = vmatprep.mubr.bf16.mxu0 0
      %924 = vmatmul.mubr.bf16.gmra.mrb[0].mxu0 %v881
      %v925 = vpop.f32.mrb[0].mxu0
      %v926 = vadd.f32 %v851, %v925
      %v927 = vpop.f32.mrb[0].mxu0
      %v928 = vpop.f32.mrb[0].mxu0
      %v929 = vadd.f32 %v851, %v928
      %v930 = vpop.f32.mrb[0].mxu0
      %931 = vdwg.mxu0
      %v932 = vmax.f32 %v918, 0.0
      %v933 = vmax.f32 %v921, 0.0
      %v934 = vmax.f32 %v926, 0.0
      %v935 = vmax.f32 %v929, 0.0
      %v936 = vpack.c.bf16 %v933, %v932
      %v937 = vpack.c.bf16 %v935, %v934
      %v938 = vld [vmem:[%s9] sm:$0xf]
      %v939 = vld [vmem:[%s9 + $0x4] sm:$0xf]
      %v940 = vld [vmem:[%s9 + $0x8] sm:$0xf]
      %v941 = vld [vmem:[%s9 + $0xc] sm:$0xf]
      %v942 = vld [vmem:[%s9 + $0x10] sm:$0xf]
      %v943 = vld [vmem:[%s9 + $0x14] sm:$0xf]
      %v944 = vld [vmem:[%s9 + $0x18] sm:$0xf]
      %v945 = vld [vmem:[%s9 + $0x1c] sm:$0xf]
      %v946 = vld [vmem:[%s10] sm:$0x1]
      %v948 = vlaneseq
      %v949 = vshrl.u32 %v948, 7
      %v950 = vsub.s32 0, %v949
      %v951 = vrot.slane %v946, %v950
      %v961 = vunpack.c.l.b16 %v938
      %v962 = vunpack.c.l.b16 %v939
      %v963 = vunpack.c.l.b16 %v940
      %v964 = vunpack.c.l.b16 %v941
      %v965 = vunpack.c.l.b16 %v942
      %v966 = vunpack.c.l.b16 %v943
      %v967 = vunpack.c.l.b16 %v944
      %v968 = vunpack.c.l.b16 %v945
      %v969 = vpack.c.b16 %v962, %v961
      %v970 = vpack.c.b16 %v964, %v963
      %v971 = vpack.c.b16 %v966, %v965
      %v972 = vpack.c.b16 %v968, %v967
      %v978 = vsel %vm776, %v936, 0
      %v981 = vsel %vm776, %v937, 0
      %983 = vmatprep.subr.bf16.mxu0 0
      %984 = vmatpush1.bf16.msra.mxu0 %v969
      %985 = vmatprep.subr.bf16.mxu0 0
      %986 = vmatpush1.bf16.msra.mxu0 %v970
      %987 = vmatprep.subr.bf16.mxu0 0
      %988 = vmatpush1.bf16.msra.mxu0 %v971
      %989 = vmatprep.subr.bf16.mxu0 0
      %990 = vmatpush1.bf16.msra.mxu0 %v972
      %991 = vmatprep.subr.bf16.mxu0 0
      %992 = vmatpush1.bf16.msra.mxu0 0
      %993 = vmatprep.subr.bf16.mxu0 0
      %994 = vmatpush1.bf16.msra.mxu0 0
      %995 = vmatprep.subr.bf16.mxu0 0
      %996 = vmatpush1.bf16.msra.mxu0 0
      %997 = vmatprep.subr.bf16.mxu0 0
      %998 = vmatpush1.bf16.msra.mxu0 0
      %999 = vmatprep.subr.bf16.mxu0 0
      %1000 = vmatpush1.bf16.msra.mxu0 0
      %1001 = vmatprep.subr.bf16.mxu0 0
      %1002 = vmatpush1.bf16.msra.mxu0 0
      %1003 = vmatprep.subr.bf16.mxu0 0
      %1004 = vmatpush1.bf16.msra.mxu0 0
      %1005 = vmatprep.subr.bf16.mxu0 0
      %1006 = vmatpush1.bf16.msra.mxu0 0
      %1007 = vmatprep.subr.bf16.mxu0 0
      %1008 = vmatpush1.bf16.msra.mxu0 0
      %1009 = vmatprep.subr.bf16.mxu0 0
      %1010 = vmatpush1.bf16.msra.mxu0 0
      %1011 = vmatprep.subr.bf16.mxu0 0
      %1012 = vmatpush1.bf16.msra.mxu0 0
      %1013 = vmatprep.subr.bf16.mxu0 0
      %1014 = vmatpush1.bf16.msra.mxu0 0
      %1015 = vmatprep.mubr.bf16.mxu0 0
      %1016 = vmatmul.mubr.bf16.gmra.mrb[0].mxu0 %v978
      %v1017 = vpop.f32.mrb[0].mxu0
      %v1018 = vadd.f32 %v951, %v1017
      %v1019 = vpop.f32.mrb[0].mxu0
      %v1020 = vpop.f32.mrb[0].mxu0
      %v1021 = vadd.f32 %v951, %v1020
      %v1022 = vpop.f32.mrb[0].mxu0
      %1023 = vmatprep.mubr.bf16.mxu0 0
      %1024 = vmatmul.mubr.bf16.gmra.mrb[0].mxu0 %v981
      %v1025 = vpop.f32.mrb[0].mxu0
      %v1026 = vadd.f32 %v951, %v1025
      %v1027 = vpop.f32.mrb[0].mxu0
      %v1028 = vpop.f32.mrb[0].mxu0
      %v1029 = vadd.f32 %v951, %v1028
      %v1030 = vpop.f32.mrb[0].mxu0
      %1031 = vdwg.mxu0
      %v1032 = vld [vmem:[%s617] sm:$0xff]
      %v1033 = vld [vmem:[%s617 + $0x8] sm:$0xff]
      %v1034 = vld [vmem:[%s617 + $0x10] sm:$0xff]
      %v1035 = vld [vmem:[%s617 + $0x18] sm:$0xff]
      %v1036 = vld [vmem:[%s11] sm:$0xff]
      %v1037 = vld [vmem:[%s11 + $0x8] sm:$0xff]
      %vm1038 = vcmask 130048
      %v1040 = vsel %vm1038, %v1032, 0
      %v1043 = vsel %vm1038, %v1033, 0
      %v1046 = vsel %vm1038, %v1034, 0
      %v1049 = vsel %vm1038, %v1035, 0
      %1051 = vmatprep.subr.mxu0 0.0
      %1052 = vmatpush1.msra.mxu0 %v1036
      %1053 = vmatprep.subr.mxu0 0.0
      %1054 = vmatpush1.msra.mxu0 %v1037
      %1055 = vmatprep.subr.mxu0 0.0
      %1056 = vmatpush1.msra.mxu0 0.0
      %1057 = vmatprep.subr.mxu0 0.0
      %1058 = vmatpush1.msra.mxu0 0.0
      %1059 = vmatprep.subr.mxu0 0.0
      %1060 = vmatpush1.msra.mxu0 0.0
      %1061 = vmatprep.subr.mxu0 0.0
      %1062 = vmatpush1.msra.mxu0 0.0
      %1063 = vmatprep.subr.mxu0 0.0
      %1064 = vmatpush1.msra.mxu0 0.0
      %1065 = vmatprep.subr.mxu0 0.0
      %1066 = vmatpush1.msra.mxu0 0.0
      %1067 = vmatprep.subr.mxu0 0.0
      %1068 = vmatpush1.msra.mxu0 0.0
      %1069 = vmatprep.subr.mxu0 0.0
      %1070 = vmatpush1.msra.mxu0 0.0
      %1071 = vmatprep.subr.mxu0 0.0
      %1072 = vmatpush1.msra.mxu0 0.0
      %1073 = vmatprep.subr.mxu0 0.0
      %1074 = vmatpush1.msra.mxu0 0.0
      %1075 = vmatprep.subr.mxu0 0.0
      %1076 = vmatpush1.msra.mxu0 0.0
      %1077 = vmatprep.subr.mxu0 0.0
      %1078 = vmatpush1.msra.mxu0 0.0
      %1079 = vmatprep.subr.mxu0 0.0
      %1080 = vmatpush1.msra.mxu0 0.0
      %1081 = vmatprep.subr.mxu0 0.0
      %1082 = vmatpush1.msra.mxu0 0.0
      %1083 = vmatprep.subr.mxu0 0.0
      %1084 = vmatpush1.msra.mxu0 0.0
      %1085 = vmatprep.subr.mxu0 0.0
      %1086 = vmatpush1.msra.mxu0 0.0
      %1087 = vmatprep.subr.mxu0 0.0
      %1088 = vmatpush1.msra.mxu0 0.0
      %1089 = vmatprep.subr.mxu0 0.0
      %1090 = vmatpush1.msra.mxu0 0.0
      %1091 = vmatprep.subr.mxu0 0.0
      %1092 = vmatpush1.msra.mxu0 0.0
      %1093 = vmatprep.subr.mxu0 0.0
      %1094 = vmatpush1.msra.mxu0 0.0
      %1095 = vmatprep.subr.mxu0 0.0
      %1096 = vmatpush1.msra.mxu0 0.0
      %1097 = vmatprep.subr.mxu0 0.0
      %1098 = vmatpush1.msra.mxu0 0.0
      %1099 = vmatprep.subr.mxu0 0.0
      %1100 = vmatpush1.msra.mxu0 0.0
      %1101 = vmatprep.subr.mxu0 0.0
      %1102 = vmatpush1.msra.mxu0 0.0
      %1103 = vmatprep.subr.mxu0 0.0
      %1104 = vmatpush1.msra.mxu0 0.0
      %1105 = vmatprep.subr.mxu0 0.0
      %1106 = vmatpush1.msra.mxu0 0.0
      %1107 = vmatprep.subr.mxu0 0.0
      %1108 = vmatpush1.msra.mxu0 0.0
      %1109 = vmatprep.subr.mxu0 0.0
      %1110 = vmatpush1.msra.mxu0 0.0
      %1111 = vmatprep.subr.mxu0 0.0
      %1112 = vmatpush1.msra.mxu0 0.0
      %1113 = vmatprep.subr.mxu0 0.0
      %1114 = vmatpush1.msra.mxu0 0.0
      %1115 = vmatprep.mubr.f32.mxu0 0.0
      %1116 = vmatmul.mubr.f32.gmra.mrb[0].mxu0 %v1040
      %v1117 = vpop.f32.mrb[0].mxu0
      %v1118 = vadd.f32 0.0, %v1117
      %v1119 = vpop.f32.mrb[0].mxu0
      %1120 = vmatprep.mubr.f32.mxu0 0.0
      %1121 = vmatmul.mubr.f32.gmra.mrb[0].mxu0 %v1043
      %v1122 = vpop.f32.mrb[0].mxu0
      %v1123 = vadd.f32 0.0, %v1122
      %v1124 = vpop.f32.mrb[0].mxu0
      %1125 = vmatprep.mubr.f32.mxu0 0.0
      %1126 = vmatmul.mubr.f32.gmra.mrb[0].mxu0 %v1046
      %v1127 = vpop.f32.mrb[0].mxu0
      %v1128 = vadd.f32 0.0, %v1127
      %v1129 = vpop.f32.mrb[0].mxu0
      %1130 = vmatprep.mubr.f32.mxu0 0.0
      %1131 = vmatmul.mubr.f32.gmra.mrb[0].mxu0 %v1049
      %v1132 = vpop.f32.mrb[0].mxu0
      %v1133 = vadd.f32 0.0, %v1132
      %v1134 = vpop.f32.mrb[0].mxu0
      %1135 = vdwg.mxu0
      %v1136 = vadd.f32 %v1018, %v1118
      %v1137 = vadd.f32 %v1021, %v1123
      %v1138 = vadd.f32 %v1026, %v1128
      %v1139 = vadd.f32 %v1029, %v1133
      %1140 = vmax.xlane.f32.xlu0 %v1136
      %v1141 = vpop.xlane.xlu0 %1140
      %1142 = vmax.xlane.f32.xlu0 %v1137
      %v1143 = vpop.xlane.xlu0 %1142
      %1144 = vmax.xlane.f32.xlu0 %v1138
      %v1145 = vpop.xlane.xlu0 %1144
      %1146 = vmax.xlane.f32.xlu0 %v1139
      %v1147 = vpop.xlane.xlu0 %1146
      %v1148 = vsub.f32 %v1136, %v1141
      %v1149 = vsub.f32 %v1137, %v1143
      %v1150 = vsub.f32 %v1138, %v1145
      %v1151 = vsub.f32 %v1139, %v1147
      %v1152 = vmul.f32 %v1148, 1.442695
      %v1153 = vpow.pop %v1152
      %v1154 = vmul.f32 %v1149, 1.442695
      %v1155 = vpow.pop %v1154
      %v1156 = vmul.f32 %v1150, 1.442695
      %v1157 = vpow.pop %v1156
      %v1158 = vmul.f32 %v1151, 1.442695
      %v1159 = vpow.pop %v1158
      %v1160 = vld [vmem:[%s12] sm:$0xff]
      %v1161 = vld [vmem:[%s12 + $0x8] sm:$0xff]
      %v1162 = vld [vmem:[%s12 + $0x10] sm:$0xff]
      %v1163 = vld [vmem:[%s12 + $0x18] sm:$0xff]
      %v1164 = vld [vmem:[%s12 + $0x20] sm:$0xff]
      %v1165 = vld [vmem:[%s12 + $0x28] sm:$0xff]
      %v1166 = vld [vmem:[%s12 + $0x30] sm:$0xff]
      %v1167 = vld [vmem:[%s12 + $0x38] sm:$0xff]
      %v1168 = vld [vmem:[%s12 + $0x40] sm:$0xff]
      %v1169 = vld [vmem:[%s12 + $0x48] sm:$0xff]
      %v1170 = vld [vmem:[%s12 + $0x50] sm:$0xff]
      %v1171 = vld [vmem:[%s12 + $0x58] sm:$0xff]
      %v1172 = vld [vmem:[%s12 + $0x60] sm:$0xff]
      %v1173 = vld [vmem:[%s12 + $0x68] sm:$0xff]
      %v1174 = vld [vmem:[%s12 + $0x70] sm:$0xff]
      %v1175 = vld [vmem:[%s12 + $0x78] sm:$0xff]
      %1176 = vmatprep.subr.mxu0 0.0
      %1177 = vmatpush1.msra.mxu0 %v1160
      %1178 = vmatprep.subr.mxu0 0.0
      %1179 = vmatpush1.msra.mxu0 %v1161
      %1180 = vmatprep.subr.mxu0 0.0
      %1181 = vmatpush1.msra.mxu0 %v1162
      %1182 = vmatprep.subr.mxu0 0.0
      %1183 = vmatpush1.msra.mxu0 %v1163
      %1184 = vmatprep.subr.mxu0 0.0
      %1185 = vmatpush1.msra.mxu0 %v1164
      %1186 = vmatprep.subr.mxu0 0.0
      %1187 = vmatpush1.msra.mxu0 %v1165
      %1188 = vmatprep.subr.mxu0 0.0
      %1189 = vmatpush1.msra.mxu0 %v1166
      %1190 = vmatprep.subr.mxu0 0.0
      %1191 = vmatpush1.msra.mxu0 %v1167
      %1192 = vmatprep.subr.mxu0 0.0
      %1193 = vmatpush1.msra.mxu0 %v1168
      %1194 = vmatprep.subr.mxu0 0.0
      %1195 = vmatpush1.msra.mxu0 %v1169
      %1196 = vmatprep.subr.mxu0 0.0
      %1197 = vmatpush1.msra.mxu0 %v1170
      %1198 = vmatprep.subr.mxu0 0.0
      %1199 = vmatpush1.msra.mxu0 %v1171
      %1200 = vmatprep.subr.mxu0 0.0
      %1201 = vmatpush1.msra.mxu0 %v1172
      %1202 = vmatprep.subr.mxu0 0.0
      %1203 = vmatpush1.msra.mxu0 %v1173
      %1204 = vmatprep.subr.mxu0 0.0
      %1205 = vmatpush1.msra.mxu0 %v1174
      %1206 = vmatprep.subr.mxu0 0.0
      %1207 = vmatpush1.msra.mxu0 %v1175
      %1208 = vmatprep.subr.mxu0 0.0
      %1209 = vmatpush1.msra.mxu0 0.0
      %1210 = vmatprep.subr.mxu0 0.0
      %1211 = vmatpush1.msra.mxu0 0.0
      %1212 = vmatprep.subr.mxu0 0.0
      %1213 = vmatpush1.msra.mxu0 0.0
      %1214 = vmatprep.subr.mxu0 0.0
      %1215 = vmatpush1.msra.mxu0 0.0
      %1216 = vmatprep.subr.mxu0 0.0
      %1217 = vmatpush1.msra.mxu0 0.0
      %1218 = vmatprep.subr.mxu0 0.0
      %1219 = vmatpush1.msra.mxu0 0.0
      %1220 = vmatprep.subr.mxu0 0.0
      %1221 = vmatpush1.msra.mxu0 0.0
      %1222 = vmatprep.subr.mxu0 0.0
      %1223 = vmatpush1.msra.mxu0 0.0
      %1224 = vmatprep.subr.mxu0 0.0
      %1225 = vmatpush1.msra.mxu0 0.0
      %1226 = vmatprep.subr.mxu0 0.0
      %1227 = vmatpush1.msra.mxu0 0.0
      %1228 = vmatprep.subr.mxu0 0.0
      %1229 = vmatpush1.msra.mxu0 0.0
      %1230 = vmatprep.subr.mxu0 0.0
      %1231 = vmatpush1.msra.mxu0 0.0
      %1232 = vmatprep.subr.mxu0 0.0
      %1233 = vmatpush1.msra.mxu0 0.0
      %1234 = vmatprep.subr.mxu0 0.0
      %1235 = vmatpush1.msra.mxu0 0.0
      %1236 = vmatprep.subr.mxu0 0.0
      %1237 = vmatpush1.msra.mxu0 0.0
      %1238 = vmatprep.subr.mxu0 0.0
      %1239 = vmatpush1.msra.mxu0 0.0
      %1240 = vmatprep.mubr.f32.mxu0 0.0
      %1241 = vmatmul.mubr.f32.gmra.mrb[0].mxu0 %v1153
      %v1242 = vpop.f32.mrb[0].mxu0
      %v1243 = vadd.f32 0.0, %v1242
      %v1244 = vpop.f32.mrb[0].mxu0
      %1245 = vmatprep.mubr.f32.mxu0 0.0
      %1246 = vmatmul.mubr.f32.gmra.mrb[0].mxu0 %v1155
      %v1247 = vpop.f32.mrb[0].mxu0
      %v1248 = vadd.f32 0.0, %v1247
      %v1249 = vpop.f32.mrb[0].mxu0
      %1250 = vmatprep.mubr.f32.mxu0 0.0
      %1251 = vmatmul.mubr.f32.gmra.mrb[0].mxu0 %v1157
      %v1252 = vpop.f32.mrb[0].mxu0
      %v1253 = vadd.f32 0.0, %v1252
      %v1254 = vpop.f32.mrb[0].mxu0
      %1255 = vmatprep.mubr.f32.mxu0 0.0
      %1256 = vmatmul.mubr.f32.gmra.mrb[0].mxu0 %v1159
      %v1257 = vpop.f32.mrb[0].mxu0
      %v1258 = vadd.f32 0.0, %v1257
      %v1259 = vpop.f32.mrb[0].mxu0
      %1260 = vdwg.mxu0
      %v1261 = vmax.f32 %v1243, 1e-30
      %v1262 = vmax.f32 %v1248, 1e-30
      %v1263 = vmax.f32 %v1253, 1e-30
      %v1264 = vmax.f32 %v1258, 1e-30
      %v1265 = vrcp.pop %v1261
      %v1266 = vmul.f32 1.0, %v1265
      %v1267 = vrcp.pop %v1262
      %v1268 = vmul.f32 1.0, %v1267
      %v1269 = vrcp.pop %v1263
      %v1270 = vmul.f32 1.0, %v1269
      %v1271 = vrcp.pop %v1264
      %v1272 = vmul.f32 1.0, %v1271
      %v1273 = vld [vmem:[%s13] sm:$0xf]
      %vm1274 = vcmask 31744
      %v1276 = vsel %vm1274, %v1266, 0
      %v1279 = vsel %vm1274, %v1268, 0
      %v1282 = vsel %vm1274, %v1270, 0
      %v1285 = vsel %vm1274, %v1272, 0
      %vm1287 = vcmask 1043456
      %v1289 = vsel %vm1287, %v1273, 0
      %1291 = vmatprep.subr.mxu0 0.0
      %1292 = vmatpush1.msra.mxu0 %v1289
      %1293 = vmatprep.subr.mxu0 0.0
      %1294 = vmatpush1.msra.mxu0 0.0
      %1295 = vmatprep.subr.mxu0 0.0
      %1296 = vmatpush1.msra.mxu0 0.0
      %1297 = vmatprep.subr.mxu0 0.0
      %1298 = vmatpush1.msra.mxu0 0.0
      %1299 = vmatprep.subr.mxu0 0.0
      %1300 = vmatpush1.msra.mxu0 0.0
      %1301 = vmatprep.subr.mxu0 0.0
      %1302 = vmatpush1.msra.mxu0 0.0
      %1303 = vmatprep.subr.mxu0 0.0
      %1304 = vmatpush1.msra.mxu0 0.0
      %1305 = vmatprep.subr.mxu0 0.0
      %1306 = vmatpush1.msra.mxu0 0.0
      %1307 = vmatprep.subr.mxu0 0.0
      %1308 = vmatpush1.msra.mxu0 0.0
      %1309 = vmatprep.subr.mxu0 0.0
      %1310 = vmatpush1.msra.mxu0 0.0
      %1311 = vmatprep.subr.mxu0 0.0
      %1312 = vmatpush1.msra.mxu0 0.0
      %1313 = vmatprep.subr.mxu0 0.0
      %1314 = vmatpush1.msra.mxu0 0.0
      %1315 = vmatprep.subr.mxu0 0.0
      %1316 = vmatpush1.msra.mxu0 0.0
      %1317 = vmatprep.subr.mxu0 0.0
      %1318 = vmatpush1.msra.mxu0 0.0
      %1319 = vmatprep.subr.mxu0 0.0
      %1320 = vmatpush1.msra.mxu0 0.0
      %1321 = vmatprep.subr.mxu0 0.0
      %1322 = vmatpush1.msra.mxu0 0.0
      %1323 = vmatprep.subr.mxu0 0.0
      %1324 = vmatpush1.msra.mxu0 0.0
      %1325 = vmatprep.subr.mxu0 0.0
      %1326 = vmatpush1.msra.mxu0 0.0
      %1327 = vmatprep.subr.mxu0 0.0
      %1328 = vmatpush1.msra.mxu0 0.0
      %1329 = vmatprep.subr.mxu0 0.0
      %1330 = vmatpush1.msra.mxu0 0.0
      %1331 = vmatprep.subr.mxu0 0.0
      %1332 = vmatpush1.msra.mxu0 0.0
      %1333 = vmatprep.subr.mxu0 0.0
      %1334 = vmatpush1.msra.mxu0 0.0
      %1335 = vmatprep.subr.mxu0 0.0
      %1336 = vmatpush1.msra.mxu0 0.0
      %1337 = vmatprep.subr.mxu0 0.0
      %1338 = vmatpush1.msra.mxu0 0.0
      %1339 = vmatprep.subr.mxu0 0.0
      %1340 = vmatpush1.msra.mxu0 0.0
      %1341 = vmatprep.subr.mxu0 0.0
      %1342 = vmatpush1.msra.mxu0 0.0
      %1343 = vmatprep.subr.mxu0 0.0
      %1344 = vmatpush1.msra.mxu0 0.0
      %1345 = vmatprep.subr.mxu0 0.0
      %1346 = vmatpush1.msra.mxu0 0.0
      %1347 = vmatprep.subr.mxu0 0.0
      %1348 = vmatpush1.msra.mxu0 0.0
      %1349 = vmatprep.subr.mxu0 0.0
      %1350 = vmatpush1.msra.mxu0 0.0
      %1351 = vmatprep.subr.mxu0 0.0
      %1352 = vmatpush1.msra.mxu0 0.0
      %1353 = vmatprep.subr.mxu0 0.0
      %1354 = vmatpush1.msra.mxu0 0.0
      %1355 = vmatprep.mubr.f32.mxu0 0.0
      %1356 = vmatmul.mubr.f32.gmra.mrb[0].mxu0 %v1276
      %v1357 = vpop.f32.mrb[0].mxu0
      %v1358 = vadd.f32 0.0, %v1357
      %v1359 = vpop.f32.mrb[0].mxu0
      %1360 = vmatprep.mubr.f32.mxu0 0.0
      %1361 = vmatmul.mubr.f32.gmra.mrb[0].mxu0 %v1279
      %v1362 = vpop.f32.mrb[0].mxu0
      %v1363 = vadd.f32 0.0, %v1362
      %v1364 = vpop.f32.mrb[0].mxu0
      %1365 = vmatprep.mubr.f32.mxu0 0.0
      %1366 = vmatmul.mubr.f32.gmra.mrb[0].mxu0 %v1282
      %v1367 = vpop.f32.mrb[0].mxu0
      %v1368 = vadd.f32 0.0, %v1367
      %v1369 = vpop.f32.mrb[0].mxu0
      %1370 = vmatprep.mubr.f32.mxu0 0.0
      %1371 = vmatmul.mubr.f32.gmra.mrb[0].mxu0 %v1285
      %v1372 = vpop.f32.mrb[0].mxu0
      %v1373 = vadd.f32 0.0, %v1372
      %v1374 = vpop.f32.mrb[0].mxu0
      %1375 = vdwg.mxu0
      %v1376 = vmul.f32 %v1153, %v1358
      %v1377 = vmul.f32 %v1155, %v1363
      %v1378 = vmul.f32 %v1157, %v1368
      %v1379 = vmul.f32 %v1159, %v1373
      %v1380 = vpack.c.bf16 %v1377, %v1376
      %v1381 = vpack.c.bf16 %v1379, %v1378
      %v1382 = vld [vmem:[%s14] sm:$0xf]
      %v1383 = vld [vmem:[%s14 + $0x4] sm:$0xf]
      %v1384 = vld [vmem:[%s14 + $0x8] sm:$0xf]
      %v1385 = vld [vmem:[%s14 + $0xc] sm:$0xf]
      %v1386 = vld [vmem:[%s14 + $0x10] sm:$0xf]
      %v1387 = vld [vmem:[%s14 + $0x14] sm:$0xf]
      %v1388 = vld [vmem:[%s14 + $0x18] sm:$0xf]
      %v1389 = vld [vmem:[%s14 + $0x1c] sm:$0xf]
      %v1390 = vld [vmem:[%s14 + $0x20] sm:$0xf]
      %v1391 = vld [vmem:[%s14 + $0x24] sm:$0xf]
      %v1392 = vld [vmem:[%s14 + $0x28] sm:$0xf]
      %v1393 = vld [vmem:[%s14 + $0x2c] sm:$0xf]
      %v1394 = vld [vmem:[%s14 + $0x30] sm:$0xf]
      %v1395 = vld [vmem:[%s14 + $0x34] sm:$0xf]
      %v1396 = vld [vmem:[%s14 + $0x38] sm:$0xf]
      %v1397 = vld [vmem:[%s14 + $0x3c] sm:$0xf]
      %v1414 = vunpack.c.l.b16 %v1382
      %v1415 = vunpack.c.l.b16 %v1383
      %v1416 = vunpack.c.l.b16 %v1384
      %v1417 = vunpack.c.l.b16 %v1385
      %v1418 = vunpack.c.l.b16 %v1386
      %v1419 = vunpack.c.l.b16 %v1387
      %v1420 = vunpack.c.l.b16 %v1388
      %v1421 = vunpack.c.l.b16 %v1389
      %v1422 = vunpack.c.l.b16 %v1390
      %v1423 = vunpack.c.l.b16 %v1391
      %v1424 = vunpack.c.l.b16 %v1392
      %v1425 = vunpack.c.l.b16 %v1393
      %v1426 = vunpack.c.l.b16 %v1394
      %v1427 = vunpack.c.l.b16 %v1395
      %v1428 = vunpack.c.l.b16 %v1396
      %v1429 = vunpack.c.l.b16 %v1397
      %v1430 = vpack.c.b16 %v1415, %v1414
      %v1431 = vpack.c.b16 %v1417, %v1416
      %v1432 = vpack.c.b16 %v1419, %v1418
      %v1433 = vpack.c.b16 %v1421, %v1420
      %v1434 = vpack.c.b16 %v1423, %v1422
      %v1435 = vpack.c.b16 %v1425, %v1424
      %v1436 = vpack.c.b16 %v1427, %v1426
      %v1437 = vpack.c.b16 %v1429, %v1428
      %1446 = vmatprep.subr.bf16.mxu0 0
      %1447 = vmatpush1.bf16.msra.mxu0 %v1430
      %1448 = vmatprep.subr.bf16.mxu0 0
      %1449 = vmatpush1.bf16.msra.mxu0 %v1431
      %1450 = vmatprep.subr.bf16.mxu0 0
      %1451 = vmatpush1.bf16.msra.mxu0 %v1432
      %1452 = vmatprep.subr.bf16.mxu0 0
      %1453 = vmatpush1.bf16.msra.mxu0 %v1433
      %1454 = vmatprep.subr.bf16.mxu0 0
      %1455 = vmatpush1.bf16.msra.mxu0 %v1434
      %1456 = vmatprep.subr.bf16.mxu0 0
      %1457 = vmatpush1.bf16.msra.mxu0 %v1435
      %1458 = vmatprep.subr.bf16.mxu0 0
      %1459 = vmatpush1.bf16.msra.mxu0 %v1436
      %1460 = vmatprep.subr.bf16.mxu0 0
      %1461 = vmatpush1.bf16.msra.mxu0 %v1437
      %1462 = vmatprep.subr.bf16.mxu0 0
      %1463 = vmatpush1.bf16.msra.mxu0 0
      %1464 = vmatprep.subr.bf16.mxu0 0
      %1465 = vmatpush1.bf16.msra.mxu0 0
      %1466 = vmatprep.subr.bf16.mxu0 0
      %1467 = vmatpush1.bf16.msra.mxu0 0
      %1468 = vmatprep.subr.bf16.mxu0 0
      %1469 = vmatpush1.bf16.msra.mxu0 0
      %1470 = vmatprep.subr.bf16.mxu0 0
      %1471 = vmatpush1.bf16.msra.mxu0 0
      %1472 = vmatprep.subr.bf16.mxu0 0
      %1473 = vmatpush1.bf16.msra.mxu0 0
      %1474 = vmatprep.subr.bf16.mxu0 0
      %1475 = vmatpush1.bf16.msra.mxu0 0
      %1476 = vmatprep.subr.bf16.mxu0 0
      %1477 = vmatpush1.bf16.msra.mxu0 0
      %1478 = vmatprep.mubr.bf16.mxu0 0
      %1479 = vmatmul.mubr.bf16.gmra.mrb[0].mxu0 %v1380
      %v1480 = vpop.f32.mrb[0].mxu0
      %v1481 = vadd.f32 0.0, %v1480
      %v1482 = vpop.f32.mrb[0].mxu0
      %v1483 = vpop.f32.mrb[0].mxu0
      %v1484 = vadd.f32 0.0, %v1483
      %v1485 = vpop.f32.mrb[0].mxu0
      %1486 = vmatprep.mubr.bf16.mxu0 0
      %1487 = vmatmul.mubr.bf16.gmra.mrb[0].mxu0 %v1381
      %v1488 = vpop.f32.mrb[0].mxu0
      %v1489 = vadd.f32 0.0, %v1488
      %v1490 = vpop.f32.mrb[0].mxu0
      %v1491 = vpop.f32.mrb[0].mxu0
      %v1492 = vadd.f32 0.0, %v1491
      %v1493 = vpop.f32.mrb[0].mxu0
      %1494 = vdwg.mxu0
      %v1495 = vld [vmem:[%s623] sm:$0xff]
      %v1496 = vld [vmem:[%s623 + $0x8] sm:$0xff]
      %v1497 = vld [vmem:[%s623 + $0x10] sm:$0xff]
      %v1498 = vld [vmem:[%s623 + $0x18] sm:$0xff]
      %v1500 = vsel %vm1274, %v1495, 0
      %v1503 = vsel %vm1274, %v1496, 0
      %v1506 = vsel %vm1274, %v1497, 0
      %v1509 = vsel %vm1274, %v1498, 0
      %1511 = vmatprep.subr.mxu0 0.0
      %1512 = vmatpush1.msra.mxu0 %v1289
      %1513 = vmatprep.subr.mxu0 0.0
      %1514 = vmatpush1.msra.mxu0 0.0
      %1515 = vmatprep.subr.mxu0 0.0
      %1516 = vmatpush1.msra.mxu0 0.0
      %1517 = vmatprep.subr.mxu0 0.0
      %1518 = vmatpush1.msra.mxu0 0.0
      %1519 = vmatprep.subr.mxu0 0.0
      %1520 = vmatpush1.msra.mxu0 0.0
      %1521 = vmatprep.subr.mxu0 0.0
      %1522 = vmatpush1.msra.mxu0 0.0
      %1523 = vmatprep.subr.mxu0 0.0
      %1524 = vmatpush1.msra.mxu0 0.0
      %1525 = vmatprep.subr.mxu0 0.0
      %1526 = vmatpush1.msra.mxu0 0.0
      %1527 = vmatprep.subr.mxu0 0.0
      %1528 = vmatpush1.msra.mxu0 0.0
      %1529 = vmatprep.subr.mxu0 0.0
      %1530 = vmatpush1.msra.mxu0 0.0
      %1531 = vmatprep.subr.mxu0 0.0
      %1532 = vmatpush1.msra.mxu0 0.0
      %1533 = vmatprep.subr.mxu0 0.0
      %1534 = vmatpush1.msra.mxu0 0.0
      %1535 = vmatprep.subr.mxu0 0.0
      %1536 = vmatpush1.msra.mxu0 0.0
      %1537 = vmatprep.subr.mxu0 0.0
      %1538 = vmatpush1.msra.mxu0 0.0
      %1539 = vmatprep.subr.mxu0 0.0
      %1540 = vmatpush1.msra.mxu0 0.0
      %1541 = vmatprep.subr.mxu0 0.0
      %1542 = vmatpush1.msra.mxu0 0.0
      %1543 = vmatprep.subr.mxu0 0.0
      %1544 = vmatpush1.msra.mxu0 0.0
      %1545 = vmatprep.subr.mxu0 0.0
      %1546 = vmatpush1.msra.mxu0 0.0
      %1547 = vmatprep.subr.mxu0 0.0
      %1548 = vmatpush1.msra.mxu0 0.0
      %1549 = vmatprep.subr.mxu0 0.0
      %1550 = vmatpush1.msra.mxu0 0.0
      %1551 = vmatprep.subr.mxu0 0.0
      %1552 = vmatpush1.msra.mxu0 0.0
      %1553 = vmatprep.subr.mxu0 0.0
      %1554 = vmatpush1.msra.mxu0 0.0
      %1555 = vmatprep.subr.mxu0 0.0
      %1556 = vmatpush1.msra.mxu0 0.0
      %1557 = vmatprep.subr.mxu0 0.0
      %1558 = vmatpush1.msra.mxu0 0.0
      %1559 = vmatprep.subr.mxu0 0.0
      %1560 = vmatpush1.msra.mxu0 0.0
      %1561 = vmatprep.subr.mxu0 0.0
      %1562 = vmatpush1.msra.mxu0 0.0
      %1563 = vmatprep.subr.mxu0 0.0
      %1564 = vmatpush1.msra.mxu0 0.0
      %1565 = vmatprep.subr.mxu0 0.0
      %1566 = vmatpush1.msra.mxu0 0.0
      %1567 = vmatprep.subr.mxu0 0.0
      %1568 = vmatpush1.msra.mxu0 0.0
      %1569 = vmatprep.subr.mxu0 0.0
      %1570 = vmatpush1.msra.mxu0 0.0
      %1571 = vmatprep.subr.mxu0 0.0
      %1572 = vmatpush1.msra.mxu0 0.0
      %1573 = vmatprep.subr.mxu0 0.0
      %1574 = vmatpush1.msra.mxu0 0.0
      %1575 = vmatprep.mubr.f32.mxu0 0.0
      %1576 = vmatmul.mubr.f32.gmra.mrb[0].mxu0 %v1500
      %v1577 = vpop.f32.mrb[0].mxu0
      %v1578 = vadd.f32 0.0, %v1577
      %v1579 = vpop.f32.mrb[0].mxu0
      %1580 = vmatprep.mubr.f32.mxu0 0.0
      %1581 = vmatmul.mubr.f32.gmra.mrb[0].mxu0 %v1503
      %v1582 = vpop.f32.mrb[0].mxu0
      %v1583 = vadd.f32 0.0, %v1582
      %v1584 = vpop.f32.mrb[0].mxu0
      %1585 = vmatprep.mubr.f32.mxu0 0.0
      %1586 = vmatmul.mubr.f32.gmra.mrb[0].mxu0 %v1506
      %v1587 = vpop.f32.mrb[0].mxu0
      %v1588 = vadd.f32 0.0, %v1587
      %v1589 = vpop.f32.mrb[0].mxu0
      %1590 = vmatprep.mubr.f32.mxu0 0.0
      %1591 = vmatmul.mubr.f32.gmra.mrb[0].mxu0 %v1509
      %v1592 = vpop.f32.mrb[0].mxu0
      %v1593 = vadd.f32 0.0, %v1592
      %v1594 = vpop.f32.mrb[0].mxu0
      %1595 = vdwg.mxu0
      %vm1596 = vcmp.lt.f32.partialorder %v1481, %v1578
      %vm1597 = vcmp.lt.f32.partialorder %v1484, %v1583
      %vm1598 = vcmp.lt.f32.partialorder %v1489, %v1588
      %vm1599 = vcmp.lt.f32.partialorder %v1492, %v1593
      %v1600 = vsel %vm1596, 1.0, 0.0
      %v1601 = vsel %vm1597, 1.0, 0.0
      %v1602 = vsel %vm1598, 1.0, 0.0
      %v1603 = vsel %vm1599, 1.0, 0.0
      %1604 = vmatprep.subr.mxu0 0.0
      %1605 = vmatpush1.msra.mxu0 %v1160
      %1606 = vmatprep.subr.mxu0 0.0
      %1607 = vmatpush1.msra.mxu0 %v1161
      %1608 = vmatprep.subr.mxu0 0.0
      %1609 = vmatpush1.msra.mxu0 %v1162
      %1610 = vmatprep.subr.mxu0 0.0
      %1611 = vmatpush1.msra.mxu0 %v1163
      %1612 = vmatprep.subr.mxu0 0.0
      %1613 = vmatpush1.msra.mxu0 %v1164
      %1614 = vmatprep.subr.mxu0 0.0
      %1615 = vmatpush1.msra.mxu0 %v1165
      %1616 = vmatprep.subr.mxu0 0.0
      %1617 = vmatpush1.msra.mxu0 %v1166
      %1618 = vmatprep.subr.mxu0 0.0
      %1619 = vmatpush1.msra.mxu0 %v1167
      %1620 = vmatprep.subr.mxu0 0.0
      %1621 = vmatpush1.msra.mxu0 %v1168
      %1622 = vmatprep.subr.mxu0 0.0
      %1623 = vmatpush1.msra.mxu0 %v1169
      %1624 = vmatprep.subr.mxu0 0.0
      %1625 = vmatpush1.msra.mxu0 %v1170
      %1626 = vmatprep.subr.mxu0 0.0
      %1627 = vmatpush1.msra.mxu0 %v1171
      %1628 = vmatprep.subr.mxu0 0.0
      %1629 = vmatpush1.msra.mxu0 %v1172
      %1630 = vmatprep.subr.mxu0 0.0
      %1631 = vmatpush1.msra.mxu0 %v1173
      %1632 = vmatprep.subr.mxu0 0.0
      %1633 = vmatpush1.msra.mxu0 %v1174
      %1634 = vmatprep.subr.mxu0 0.0
      %1635 = vmatpush1.msra.mxu0 %v1175
      %1636 = vmatprep.subr.mxu0 0.0
      %1637 = vmatpush1.msra.mxu0 0.0
      %1638 = vmatprep.subr.mxu0 0.0
      %1639 = vmatpush1.msra.mxu0 0.0
      %1640 = vmatprep.subr.mxu0 0.0
      %1641 = vmatpush1.msra.mxu0 0.0
      %1642 = vmatprep.subr.mxu0 0.0
      %1643 = vmatpush1.msra.mxu0 0.0
      %1644 = vmatprep.subr.mxu0 0.0
      %1645 = vmatpush1.msra.mxu0 0.0
      %1646 = vmatprep.subr.mxu0 0.0
      %1647 = vmatpush1.msra.mxu0 0.0
      %1648 = vmatprep.subr.mxu0 0.0
      %1649 = vmatpush1.msra.mxu0 0.0
      %1650 = vmatprep.subr.mxu0 0.0
      %1651 = vmatpush1.msra.mxu0 0.0
      %1652 = vmatprep.subr.mxu0 0.0
      %1653 = vmatpush1.msra.mxu0 0.0
      %1654 = vmatprep.subr.mxu0 0.0
      %1655 = vmatpush1.msra.mxu0 0.0
      %1656 = vmatprep.subr.mxu0 0.0
      %1657 = vmatpush1.msra.mxu0 0.0
      %1658 = vmatprep.subr.mxu0 0.0
      %1659 = vmatpush1.msra.mxu0 0.0
      %1660 = vmatprep.subr.mxu0 0.0
      %1661 = vmatpush1.msra.mxu0 0.0
      %1662 = vmatprep.subr.mxu0 0.0
      %1663 = vmatpush1.msra.mxu0 0.0
      %1664 = vmatprep.subr.mxu0 0.0
      %1665 = vmatpush1.msra.mxu0 0.0
      %1666 = vmatprep.subr.mxu0 0.0
      %1667 = vmatpush1.msra.mxu0 0.0
      %1668 = vmatprep.mubr.f32.mxu0 0.0
      %1669 = vmatmul.mubr.f32.gmra.mrb[0].mxu0 %v1600
      %v1670 = vpop.f32.mrb[0].mxu0
      %v1671 = vadd.f32 0.0, %v1670
      %v1672 = vpop.f32.mrb[0].mxu0
      %1673 = vmatprep.mubr.f32.mxu0 0.0
      %1674 = vmatmul.mubr.f32.gmra.mrb[0].mxu0 %v1601
      %v1675 = vpop.f32.mrb[0].mxu0
      %v1676 = vadd.f32 0.0, %v1675
      %v1677 = vpop.f32.mrb[0].mxu0
      %1678 = vmatprep.mubr.f32.mxu0 0.0
      %1679 = vmatmul.mubr.f32.gmra.mrb[0].mxu0 %v1602
      %v1680 = vpop.f32.mrb[0].mxu0
      %v1681 = vadd.f32 0.0, %v1680
      %v1682 = vpop.f32.mrb[0].mxu0
      %1683 = vmatprep.mubr.f32.mxu0 0.0
      %1684 = vmatmul.mubr.f32.gmra.mrb[0].mxu0 %v1603
      %v1685 = vpop.f32.mrb[0].mxu0
      %v1686 = vadd.f32 0.0, %v1685
      %v1687 = vpop.f32.mrb[0].mxu0
      %1688 = vdwg.mxu0
      %v1689 = vmin.f32 %v1671, 3.0
      %v1690 = vmin.f32 %v1676, 3.0
      %v1691 = vmin.f32 %v1681, 3.0
      %v1692 = vmin.f32 %v1686, 3.0
      %v1694 = vsel %vm1274, %v1689, 0
      %v1697 = vsel %vm1274, %v1690, 0
      %v1700 = vsel %vm1274, %v1691, 0
      %v1703 = vsel %vm1274, %v1692, 0
      %1705 = vmatprep.subr.mxu0 0.0
      %1706 = vmatpush1.msra.mxu0 %v1289
      %1707 = vmatprep.subr.mxu0 0.0
      %1708 = vmatpush1.msra.mxu0 0.0
      %1709 = vmatprep.subr.mxu0 0.0
      %1710 = vmatpush1.msra.mxu0 0.0
      %1711 = vmatprep.subr.mxu0 0.0
      %1712 = vmatpush1.msra.mxu0 0.0
      %1713 = vmatprep.subr.mxu0 0.0
      %1714 = vmatpush1.msra.mxu0 0.0
      %1715 = vmatprep.subr.mxu0 0.0
      %1716 = vmatpush1.msra.mxu0 0.0
      %1717 = vmatprep.subr.mxu0 0.0
      %1718 = vmatpush1.msra.mxu0 0.0
      %1719 = vmatprep.subr.mxu0 0.0
      %1720 = vmatpush1.msra.mxu0 0.0
      %1721 = vmatprep.subr.mxu0 0.0
      %1722 = vmatpush1.msra.mxu0 0.0
      %1723 = vmatprep.subr.mxu0 0.0
      %1724 = vmatpush1.msra.mxu0 0.0
      %1725 = vmatprep.subr.mxu0 0.0
      %1726 = vmatpush1.msra.mxu0 0.0
      %1727 = vmatprep.subr.mxu0 0.0
      %1728 = vmatpush1.msra.mxu0 0.0
      %1729 = vmatprep.subr.mxu0 0.0
      %1730 = vmatpush1.msra.mxu0 0.0
      %1731 = vmatprep.subr.mxu0 0.0
      %1732 = vmatpush1.msra.mxu0 0.0
      %1733 = vmatprep.subr.mxu0 0.0
      %1734 = vmatpush1.msra.mxu0 0.0
      %1735 = vmatprep.subr.mxu0 0.0
      %1736 = vmatpush1.msra.mxu0 0.0
      %1737 = vmatprep.subr.mxu0 0.0
      %1738 = vmatpush1.msra.mxu0 0.0
      %1739 = vmatprep.subr.mxu0 0.0
      %1740 = vmatpush1.msra.mxu0 0.0
      %1741 = vmatprep.subr.mxu0 0.0
      %1742 = vmatpush1.msra.mxu0 0.0
      %1743 = vmatprep.subr.mxu0 0.0
      %1744 = vmatpush1.msra.mxu0 0.0
      %1745 = vmatprep.subr.mxu0 0.0
      %1746 = vmatpush1.msra.mxu0 0.0
      %1747 = vmatprep.subr.mxu0 0.0
      %1748 = vmatpush1.msra.mxu0 0.0
      %1749 = vmatprep.subr.mxu0 0.0
      %1750 = vmatpush1.msra.mxu0 0.0
      %1751 = vmatprep.subr.mxu0 0.0
      %1752 = vmatpush1.msra.mxu0 0.0
      %1753 = vmatprep.subr.mxu0 0.0
      %1754 = vmatpush1.msra.mxu0 0.0
      %1755 = vmatprep.subr.mxu0 0.0
      %1756 = vmatpush1.msra.mxu0 0.0
      %1757 = vmatprep.subr.mxu0 0.0
      %1758 = vmatpush1.msra.mxu0 0.0
      %1759 = vmatprep.subr.mxu0 0.0
      %1760 = vmatpush1.msra.mxu0 0.0
      %1761 = vmatprep.subr.mxu0 0.0
      %1762 = vmatpush1.msra.mxu0 0.0
      %1763 = vmatprep.subr.mxu0 0.0
      %1764 = vmatpush1.msra.mxu0 0.0
      %1765 = vmatprep.subr.mxu0 0.0
      %1766 = vmatpush1.msra.mxu0 0.0
      %1767 = vmatprep.subr.mxu0 0.0
      %1768 = vmatpush1.msra.mxu0 0.0
      %1769 = vmatprep.mubr.f32.mxu0 0.0
      %1770 = vmatmul.mubr.f32.gmra.mrb[0].mxu0 %v1694
      %v1771 = vpop.f32.mrb[0].mxu0
      %v1772 = vadd.f32 0.0, %v1771
      %v1773 = vpop.f32.mrb[0].mxu0
      %1774 = vmatprep.mubr.f32.mxu0 0.0
      %1775 = vmatmul.mubr.f32.gmra.mrb[0].mxu0 %v1697
      %v1776 = vpop.f32.mrb[0].mxu0
      %v1777 = vadd.f32 0.0, %v1776
      %v1778 = vpop.f32.mrb[0].mxu0
      %1779 = vmatprep.mubr.f32.mxu0 0.0
      %1780 = vmatmul.mubr.f32.gmra.mrb[0].mxu0 %v1700
      %v1781 = vpop.f32.mrb[0].mxu0
      %v1782 = vadd.f32 0.0, %v1781
      %v1783 = vpop.f32.mrb[0].mxu0
      %1784 = vmatprep.mubr.f32.mxu0 0.0
      %1785 = vmatmul.mubr.f32.gmra.mrb[0].mxu0 %v1703
      %v1786 = vpop.f32.mrb[0].mxu0
      %v1787 = vadd.f32 0.0, %v1786
      %v1788 = vpop.f32.mrb[0].mxu0
      %1789 = vdwg.mxu0
      %v1790 = vld [vmem:[%s15] sm:$0x1]
      %v1792 = vlaneseq
      %v1793 = vshrl.u32 %v1792, 7
      %v1794 = vsub.s32 0, %v1793
      %v1795 = vrot.slane %v1790, %v1794
      %vm1797 = vcmp.eq.f32.partialorder %v1795, %v1772
      %vm1798 = vcmp.eq.f32.partialorder %v1795, %v1777
      %vm1799 = vcmp.eq.f32.partialorder %v1795, %v1782
      %vm1800 = vcmp.eq.f32.partialorder %v1795, %v1787
      %v1801 = vsel %vm1797, %v1376, 0.0
      %v1802 = vsel %vm1798, %v1377, 0.0
      %v1803 = vsel %vm1799, %v1378, 0.0
      %v1804 = vsel %vm1800, %v1379, 0.0
      %1805 = vmatprep.subr.mxu0 0.0
      %1806 = vmatpush1.msra.mxu0 %v1160
      %1807 = vmatprep.subr.mxu0 0.0
      %1808 = vmatpush1.msra.mxu0 %v1161
      %1809 = vmatprep.subr.mxu0 0.0
      %1810 = vmatpush1.msra.mxu0 %v1162
      %1811 = vmatprep.subr.mxu0 0.0
      %1812 = vmatpush1.msra.mxu0 %v1163
      %1813 = vmatprep.subr.mxu0 0.0
      %1814 = vmatpush1.msra.mxu0 %v1164
      %1815 = vmatprep.subr.mxu0 0.0
      %1816 = vmatpush1.msra.mxu0 %v1165
      %1817 = vmatprep.subr.mxu0 0.0
      %1818 = vmatpush1.msra.mxu0 %v1166
      %1819 = vmatprep.subr.mxu0 0.0
      %1820 = vmatpush1.msra.mxu0 %v1167
      %1821 = vmatprep.subr.mxu0 0.0
      %1822 = vmatpush1.msra.mxu0 %v1168
      %1823 = vmatprep.subr.mxu0 0.0
      %1824 = vmatpush1.msra.mxu0 %v1169
      %1825 = vmatprep.subr.mxu0 0.0
      %1826 = vmatpush1.msra.mxu0 %v1170
      %1827 = vmatprep.subr.mxu0 0.0
      %1828 = vmatpush1.msra.mxu0 %v1171
      %1829 = vmatprep.subr.mxu0 0.0
      %1830 = vmatpush1.msra.mxu0 %v1172
      %1831 = vmatprep.subr.mxu0 0.0
      %1832 = vmatpush1.msra.mxu0 %v1173
      %1833 = vmatprep.subr.mxu0 0.0
      %1834 = vmatpush1.msra.mxu0 %v1174
      %1835 = vmatprep.subr.mxu0 0.0
      %1836 = vmatpush1.msra.mxu0 %v1175
      %1837 = vmatprep.subr.mxu0 0.0
      %1838 = vmatpush1.msra.mxu0 0.0
      %1839 = vmatprep.subr.mxu0 0.0
      %1840 = vmatpush1.msra.mxu0 0.0
      %1841 = vmatprep.subr.mxu0 0.0
      %1842 = vmatpush1.msra.mxu0 0.0
      %1843 = vmatprep.subr.mxu0 0.0
      %1844 = vmatpush1.msra.mxu0 0.0
      %1845 = vmatprep.subr.mxu0 0.0
      %1846 = vmatpush1.msra.mxu0 0.0
      %1847 = vmatprep.subr.mxu0 0.0
      %1848 = vmatpush1.msra.mxu0 0.0
      %1849 = vmatprep.subr.mxu0 0.0
      %1850 = vmatpush1.msra.mxu0 0.0
      %1851 = vmatprep.subr.mxu0 0.0
      %1852 = vmatpush1.msra.mxu0 0.0
      %1853 = vmatprep.subr.mxu0 0.0
      %1854 = vmatpush1.msra.mxu0 0.0
      %1855 = vmatprep.subr.mxu0 0.0
      %1856 = vmatpush1.msra.mxu0 0.0
      %1857 = vmatprep.subr.mxu0 0.0
      %1858 = vmatpush1.msra.mxu0 0.0
      %1859 = vmatprep.subr.mxu0 0.0
      %1860 = vmatpush1.msra.mxu0 0.0
      %1861 = vmatprep.subr.mxu0 0.0
      %1862 = vmatpush1.msra.mxu0 0.0
      %1863 = vmatprep.subr.mxu0 0.0
      %1864 = vmatpush1.msra.mxu0 0.0
      %1865 = vmatprep.subr.mxu0 0.0
      %1866 = vmatpush1.msra.mxu0 0.0
      %1867 = vmatprep.subr.mxu0 0.0
      %1868 = vmatpush1.msra.mxu0 0.0
      %1869 = vmatprep.mubr.f32.mxu0 0.0
      %1870 = vmatmul.mubr.f32.gmra.mrb[0].mxu0 %v1801
      %v1871 = vpop.f32.mrb[0].mxu0
      %v1872 = vadd.f32 0.0, %v1871
      %v1873 = vpop.f32.mrb[0].mxu0
      %1874 = vmatprep.mubr.f32.mxu0 0.0
      %1875 = vmatmul.mubr.f32.gmra.mrb[0].mxu0 %v1802
      %v1876 = vpop.f32.mrb[0].mxu0
      %v1877 = vadd.f32 0.0, %v1876
      %v1878 = vpop.f32.mrb[0].mxu0
      %1879 = vmatprep.mubr.f32.mxu0 0.0
      %1880 = vmatmul.mubr.f32.gmra.mrb[0].mxu0 %v1803
      %v1881 = vpop.f32.mrb[0].mxu0
      %v1882 = vadd.f32 0.0, %v1881
      %v1883 = vpop.f32.mrb[0].mxu0
      %1884 = vmatprep.mubr.f32.mxu0 0.0
      %1885 = vmatmul.mubr.f32.gmra.mrb[0].mxu0 %v1804
      %v1886 = vpop.f32.mrb[0].mxu0
      %v1887 = vadd.f32 0.0, %v1886
      %v1888 = vpop.f32.mrb[0].mxu0
      %1889 = vdwg.mxu0
      %v1890 = vlog2.pop %v1872
      %v1891 = vmul.f32 %v1890, 0.6931472
      %v1892 = vlog2.pop %v1877
      %v1893 = vmul.f32 %v1892, 0.6931472
      %v1894 = vlog2.pop %v1882
      %v1895 = vmul.f32 %v1894, 0.6931472
      %v1896 = vlog2.pop %v1887
      %v1897 = vmul.f32 %v1896, 0.6931472
      %v1898 = vsel %vm1274, %v1891, 0.0
      %1899 = vadd.xlane.f32.xlu0 %v1898
      %v1900 = vpop.xlane.xlu0 %1899
      %v1901 = vsel %vm1274, %v1893, 0.0
      %1902 = vadd.xlane.f32.xlu0 %v1901
      %v1903 = vpop.xlane.xlu0 %1902
      %v1904 = vsel %vm1274, %v1895, 0.0
      %1905 = vadd.xlane.f32.xlu0 %v1904
      %v1906 = vpop.xlane.xlu0 %1905
      %v1907 = vsel %vm1274, %v1897, 0.0
      %1908 = vadd.xlane.f32.xlu0 %v1907
      %v1909 = vpop.xlane.xlu0 %1908
      %vm1910 = vcmask 7168
      %1911 = vst.msk [vmem:[%s635] sm:$0xff] %vm1910, %v1900
      %1912 = vst.msk [vmem:[%s635 + $0x8] sm:$0xff] %vm1910, %v1903
      %1913 = vst.msk [vmem:[%s635 + $0x10] sm:$0xff] %vm1910, %v1906
      %1914 = vst.msk [vmem:[%s635 + $0x18] sm:$0xff] %vm1910, %v1909
      %v1915 = vld [vmem:[%s16] sm:$0xf]
      %v1917 = vsel %vm1287, %v1915, 0
      %1919 = vmatprep.subr.mxu0 0.0
      %1920 = vmatpush1.msra.mxu0 %v1917
      %1921 = vmatprep.subr.mxu0 0.0
      %1922 = vmatpush1.msra.mxu0 0.0
      %1923 = vmatprep.subr.mxu0 0.0
      %1924 = vmatpush1.msra.mxu0 0.0
      %1925 = vmatprep.subr.mxu0 0.0
      %1926 = vmatpush1.msra.mxu0 0.0
      %1927 = vmatprep.subr.mxu0 0.0
      %1928 = vmatpush1.msra.mxu0 0.0
      %1929 = vmatprep.subr.mxu0 0.0
      %1930 = vmatpush1.msra.mxu0 0.0
      %1931 = vmatprep.subr.mxu0 0.0
      %1932 = vmatpush1.msra.mxu0 0.0
      %1933 = vmatprep.subr.mxu0 0.0
      %1934 = vmatpush1.msra.mxu0 0.0
      %1935 = vmatprep.subr.mxu0 0.0
      %1936 = vmatpush1.msra.mxu0 0.0
      %1937 = vmatprep.subr.mxu0 0.0
      %1938 = vmatpush1.msra.mxu0 0.0
      %1939 = vmatprep.subr.mxu0 0.0
      %1940 = vmatpush1.msra.mxu0 0.0
      %1941 = vmatprep.subr.mxu0 0.0
      %1942 = vmatpush1.msra.mxu0 0.0
      %1943 = vmatprep.subr.mxu0 0.0
      %1944 = vmatpush1.msra.mxu0 0.0
      %1945 = vmatprep.subr.mxu0 0.0
      %1946 = vmatpush1.msra.mxu0 0.0
      %1947 = vmatprep.subr.mxu0 0.0
      %1948 = vmatpush1.msra.mxu0 0.0
      %1949 = vmatprep.subr.mxu0 0.0
      %1950 = vmatpush1.msra.mxu0 0.0
      %1951 = vmatprep.subr.mxu0 0.0
      %1952 = vmatpush1.msra.mxu0 0.0
      %1953 = vmatprep.subr.mxu0 0.0
      %1954 = vmatpush1.msra.mxu0 0.0
      %1955 = vmatprep.subr.mxu0 0.0
      %1956 = vmatpush1.msra.mxu0 0.0
      %1957 = vmatprep.subr.mxu0 0.0
      %1958 = vmatpush1.msra.mxu0 0.0
      %1959 = vmatprep.subr.mxu0 0.0
      %1960 = vmatpush1.msra.mxu0 0.0
      %1961 = vmatprep.subr.mxu0 0.0
      %1962 = vmatpush1.msra.mxu0 0.0
      %1963 = vmatprep.subr.mxu0 0.0
      %1964 = vmatpush1.msra.mxu0 0.0
      %1965 = vmatprep.subr.mxu0 0.0
      %1966 = vmatpush1.msra.mxu0 0.0
      %1967 = vmatprep.subr.mxu0 0.0
      %1968 = vmatpush1.msra.mxu0 0.0
      %1969 = vmatprep.subr.mxu0 0.0
      %1970 = vmatpush1.msra.mxu0 0.0
      %1971 = vmatprep.subr.mxu0 0.0
      %1972 = vmatpush1.msra.mxu0 0.0
      %1973 = vmatprep.subr.mxu0 0.0
      %1974 = vmatpush1.msra.mxu0 0.0
      %1975 = vmatprep.subr.mxu0 0.0
      %1976 = vmatpush1.msra.mxu0 0.0
      %1977 = vmatprep.subr.mxu0 0.0
      %1978 = vmatpush1.msra.mxu0 0.0
      %1979 = vmatprep.subr.mxu0 0.0
      %1980 = vmatpush1.msra.mxu0 0.0
      %1981 = vmatprep.subr.mxu0 0.0
      %1982 = vmatpush1.msra.mxu0 0.0
      %1983 = vmatprep.mubr.f32.mxu0 0.0
      %1984 = vmatmul.mubr.f32.gmra.mrb[0].mxu0 %v1694
      %v1985 = vpop.f32.mrb[0].mxu0
      %v1986 = vadd.f32 0.0, %v1985
      %v1987 = vpop.f32.mrb[0].mxu0
      %1988 = vmatprep.mubr.f32.mxu0 0.0
      %1989 = vmatmul.mubr.f32.gmra.mrb[0].mxu0 %v1697
      %v1990 = vpop.f32.mrb[0].mxu0
      %v1991 = vadd.f32 0.0, %v1990
      %v1992 = vpop.f32.mrb[0].mxu0
      %1993 = vmatprep.mubr.f32.mxu0 0.0
      %1994 = vmatmul.mubr.f32.gmra.mrb[0].mxu0 %v1700
      %v1995 = vpop.f32.mrb[0].mxu0
      %v1996 = vadd.f32 0.0, %v1995
      %v1997 = vpop.f32.mrb[0].mxu0
      %1998 = vmatprep.mubr.f32.mxu0 0.0
      %1999 = vmatmul.mubr.f32.gmra.mrb[0].mxu0 %v1703
      %v2000 = vpop.f32.mrb[0].mxu0
      %v2001 = vadd.f32 0.0, %v2000
      %v2002 = vpop.f32.mrb[0].mxu0
      %2003 = vdwg.mxu0
      %v2004 = vadd.f32 %v1376, %v1986
      %v2005 = vadd.f32 %v1377, %v1991
      %v2006 = vadd.f32 %v1378, %v1996
      %v2007 = vadd.f32 %v1379, %v2001
      %v2008 = vpack.c.bf16 %v2005, %v2004
      %v2009 = vpack.c.bf16 %v2007, %v2006
      %v2012 = vunpack.c.l.b16 %v2008
      %v2013 = vunpack.c.h.b16 %v2008
      %v2014 = vunpack.c.l.b16 %v2009
      %v2015 = vunpack.c.h.b16 %v2009
      %v2016 = vpack.c.b16 %v2012, %v2012
      %v2017 = vpack.c.b16 %v2013, %v2013
      %v2018 = vpack.c.b16 %v2014, %v2014
      %v2019 = vpack.c.b16 %v2015, %v2015
      %2024 = vst [vmem:[%s629] sm:$0xf] %v2016
      %2025 = vst [vmem:[%s629 + $0x4] sm:$0xf] %v2017
      %2026 = vst [vmem:[%s629 + $0x8] sm:$0xf] %v2018
      %2027 = vst [vmem:[%s629 + $0xc] sm:$0xf] %v2019
      %s2028 = smul.u32 4, %s30
      %p2029 = scmp.lt.s32.totalorder %s2028, 7
      %s2030 = scalar_select %p2029, %s2028, 7
      %s2031 = smul.addr %s2030, 4
      %s2032 = scalar_lea.vmem %s17, %s2031
      %s2033 = smul.u32 4, %s30
      %p2034 = scmp.lt.s32.totalorder %s2033, 7
      %s2035 = scalar_select %p2034, %s2033, 7
      %s2036 = smul.addr %s2035, 8
      %s2037 = scalar_lea.vmem %s18, %s2036
      // Predicated region
      $region89: #{discert_actor_forward.1} parent=87 // pred_check
        %p2038 = pneg %p420
      $region90: #{discert_actor_forward.1} parent=87 // pred_check_branch
        %2040 = sbr.rel (%p2038) target = $region92
      $region91: #{discert_actor_forward.1} parent=87 // pred_region
        %s2041 = smul.u32 4, %s30
      $region92: #{discert_actor_forward.1} parent=87 // pred_fallthru
        _
      // Predicated region
      $region93: #{discert_actor_forward.1} parent=87 // pred_check
        %p2042 = pneg %p446
      $region94: #{discert_actor_forward.1} parent=87 // pred_check_branch
        %2044 = sbr.rel (%p2042) target = $region96
      $region95: #{discert_actor_forward.1} parent=87 // pred_region
        %s2045 = smul.u32 4, %s30
      $region96: #{discert_actor_forward.1} parent=87 // pred_fallthru
        _
    $region88: #{discert_actor_forward.1} parent=5 // pred_fallthru
      _
    %p2046 = scmp.le.s32.totalorder 2, %s25
    // Predicated region
    $region97: #{discert_actor_forward.1} parent=5 // pred_check
      %p2047 = pneg %p2046
    $region98: #{discert_actor_forward.1} parent=5 // pred_check_branch
      %2049 = sbr.rel (%p2047) target = $region100
    $region99: #{discert_actor_forward.1} parent=5 // pred_region
      %s2050 = ssub.s32 %s25, 2
      // Predicated region
      $region101: #{discert_actor_forward.1} parent=99 // pred_check
        %p2051 = pneg %p426
      $region102: #{discert_actor_forward.1} parent=99 // pred_check_branch
        %2053 = sbr.rel (%p2051) target = $region104
      $region103: #{discert_actor_forward.1} parent=99 // pred_region
        %s2054 = smul.u32 4, %s31
        %p2055 = scmp.lt.s32.totalorder %s2054, 7
        %s2056 = scalar_select %p2055, %s2054, 7
        %s2057 = smul.addr %s2056, 4
        %s2058 = scalar_lea.vmem %s17, %s2057
      $region104: #{discert_actor_forward.1} parent=99 // pred_fallthru
        _
      // Predicated region
      $region105: #{discert_actor_forward.1} parent=99 // pred_check
        %p2059 = pneg %p452
      $region106: #{discert_actor_forward.1} parent=99 // pred_check_branch
        %2061 = sbr.rel (%p2059) target = $region108
      $region107: #{discert_actor_forward.1} parent=99 // pred_region
        %s2062 = smul.u32 4, %s31
        %p2063 = scmp.lt.s32.totalorder %s2062, 7
        %s2064 = scalar_select %p2063, %s2062, 7
        %s2065 = smul.addr %s2064, 8
        %s2066 = scalar_lea.vmem %s18, %s2065
      $region108: #{discert_actor_forward.1} parent=99 // pred_fallthru
        _
    $region100: #{discert_actor_forward.1} parent=5 // pred_fallthru
      _
  $region6: #{discert_actor_forward.1} parent=0 // loop_footer
    %s29 = sadd.s32 1, %s25
  $region7: #{discert_actor_forward.1} parent=0 // loop_footer_branch
    %24 = sbr.rel target = $region3
  $region8: #{discert_actor_forward.1} parent=0 // loop_exit
    _

</llo_original>
